<compile_context>
chip_gen: v5e
topology: v5e:2x2
jax: 0.10.0
libtpu: 0.0.40
codegen_flags: <defaults>
</compile_context>

<pallas_src>
import jax
import jax.numpy as jnp
from jax.experimental import pallas as pl
from jax.experimental.pallas import tpu as pltpu

LN_EPS = 1e-5


# ----------------------------------------------------------------------------
# Fused forward kernel: one grid step per batch element.
#   x_ref    : (1, N, T, C)     input activation (channels-last)
#   lng_ref  : (L, N, C)        gammas of the L 'N' (LayerNorm) layers
#   lnb_ref  : (L, N, C)        betas  of the L 'N' layers
#   w1_ref   : (KT, C, C)       tconv1 weight, (tap, c_in, c_out)
#   b1_ref   : (1, C)           tconv1 bias
#   lnog_ref : (N, C)           OutputLayer.ln gamma
#   lnob_ref : (N, C)           OutputLayer.ln beta
#   w2_ref   : (C, C)           tconv2 (1x1) weight, (c_in, c_out)
#   b2_ref   : (1, C)           tconv2 bias
#   wfc_ref  : (C, N*TP, N*O)   fc weight with the NCHW reshape folded in
#   bfc_ref  : (1, N*O)         fc bias tiled per output row
#   o_ref    : (1, 1, N*O)      flattened (N, O) output for this batch
# ----------------------------------------------------------------------------
def _fused_kernel(x_ref, lng_ref, lnb_ref, w1_ref, b1_ref, lnog_ref, lnob_ref,
                  w2_ref, b2_ref, wfc_ref, bfc_ref, o_ref):
    N, T, C = x_ref.shape[1], x_ref.shape[2], x_ref.shape[3]
    L = lng_ref.shape[0]
    KT = w1_ref.shape[0]
    TP = T - KT + 1

    def ln_nc(v, g, b):
        # LayerNorm([n, c]): stats over (node, channel) per time step; v: (N, T, C)
        m = jnp.mean(jnp.mean(v, axis=2, keepdims=True), axis=0, keepdims=True)
        vc = v - m                                            # reuse centered tensor
        var = jnp.mean(jnp.mean(vc * vc, axis=2, keepdims=True), axis=0,
                       keepdims=True)
        inv = jax.lax.rsqrt(var + LN_EPS)
        return vc * inv * g[:, None, :] + b[:, None, :]

    x = x_ref[0].astype(jnp.float32)                          # (N, T, C)

    # --- stacked 'N' layers (static unroll over L) ---
    for l in range(L):
        x = ln_nc(x, lng_ref[l].astype(jnp.float32),
                  lnb_ref[l].astype(jnp.float32))

    # --- OutputLayer.tconv1: Conv2d(c, c, (1, KT)) == per-tap batched matmuls ---
    acc = jnp.zeros((N, TP, C), jnp.float32)
    for k in range(KT):                                       # KT small, static unroll
        xk = x[:, k:k + TP, :].reshape(N * TP, C)
        acc = acc + jnp.dot(xk, w1_ref[k].astype(jnp.float32),
                            preferred_element_type=jnp.float32).reshape(N, TP, C)
    acc = acc + b1_ref[...].astype(jnp.float32)               # (1, C) broadcast

    # --- OutputLayer.ln ---
    y = ln_nc(acc, lnog_ref[...].astype(jnp.float32),
              lnob_ref[...].astype(jnp.float32))

    # --- OutputLayer.tconv2: 1x1 conv == channel matmul ---
    y2 = jnp.dot(y.reshape(N * TP, C), w2_ref[...].astype(jnp.float32),
                 preferred_element_type=jnp.float32) + b2_ref[...].astype(jnp.float32)

    # --- OutputLayer.fc, PyTorch's NCHW reshape already folded into wfc_ref ---
    out = bfc_ref[...].astype(jnp.float32)                    # (1, N*O)
    for c in range(C):                                        # C small, static unroll
        out = out + jnp.sum(y2[:, c:c + 1] * wfc_ref[c].astype(jnp.float32),
                            axis=0, keepdims=True)
    o_ref[...] = out[None].astype(o_ref.dtype)


# ----------------------------------------------------------------------------
# Host-side prep: fold `x_t2.reshape(b, n, -1)` (a row-major flatten of the NCHW
# (b, c, n, t') conv output) plus the Linear into an expanded weight so the
# kernel can consume the conv output in its natural channels-last (n*t', c)
# layout without any transpose:
#   out[b, i*O + o] = bfc[o] + sum_{ci,nn,tt} y2[b, nn*TP + tt, ci]
#                                             * wc[ci, nn*TP + tt, i*O + o]
# ----------------------------------------------------------------------------
def _build_fc_weight(wfc, bfc, n, tp, c):
    o_dim = wfc.shape[0]
    ci, nn, tt, oo = jnp.meshgrid(jnp.arange(c), jnp.arange(n), jnp.arange(tp),
                                  jnp.arange(o_dim), indexing="ij")
    flat = ci * (n * tp) + nn * tp + tt       # position in PyTorch's NCHW flatten
    row = flat // (c * tp)                    # fc "node" row that element lands in
    col = flat % (c * tp)                     # fc input column within that row
    wc = jnp.zeros((c, n, tp, n * o_dim), wfc.dtype)
    wc = wc.at[ci, nn, tt, row * o_dim + oo].set(wfc[oo, col])
    wc = wc.reshape(c, n * tp, n * o_dim)
    bfc_eff = jnp.tile(bfc, n).reshape(1, n * o_dim)
    return wc, bfc_eff


# ----------------------------------------------------------------------------
# Full forward: one pallas_call, grid=(B,).
# ----------------------------------------------------------------------------
def tree_at_tcn_forward(x, params, control_str="NN"):
    # x: (b, n, t, c) channels-last, matching the PyTorch module's convention.
    assert all(ch == "N" for ch in control_str), control_str
    B, N, T, C = x.shape

    # Parameter prep (once, host side).
    lng = jnp.stack([g for g, _ in params["ln_layers"]])          # (L, N, C)
    lnb = jnp.stack([b for _, b in params["ln_layers"]])          # (L, N, C)
    L = lng.shape[0]
    w1 = jnp.transpose(params["w1"][:, :, 0, :], (2, 1, 0))       # (KT, ci, co)
    KT = w1.shape[0]
    TP = T - KT + 1
    w2 = jnp.transpose(params["w2"][:, :, 0, 0])                  # (ci, co)
    O = params["Wfc"].shape[0]
    wfc, bfc = _build_fc_weight(params["Wfc"], params["bfc"], N, TP, C)

    out_flat = pl.pallas_call(
        _fused_kernel,
        out_shape=jax.ShapeDtypeStruct((B, 1, N * O), x.dtype),
        grid=(B,),
        in_specs=[
            pl.BlockSpec((1, N, T, C), lambda i: (i, 0, 0, 0)),
            pl.BlockSpec((L, N, C), lambda i: (0, 0, 0)),
            pl.BlockSpec((L, N, C), lambda i: (0, 0, 0)),
            pl.BlockSpec((KT, C, C), lambda i: (0, 0, 0)),
            pl.BlockSpec((1, C), lambda i: (0, 0)),
            pl.BlockSpec((N, C), lambda i: (0, 0)),
            pl.BlockSpec((N, C), lambda i: (0, 0)),
            pl.BlockSpec((C, C), lambda i: (0, 0)),
            pl.BlockSpec((1, C), lambda i: (0, 0)),
            pl.BlockSpec((C, N * TP, N * O), lambda i: (0, 0, 0)),
            pl.BlockSpec((1, N * O), lambda i: (0, 0)),
        ],
        out_specs=pl.BlockSpec((1, 1, N * O), lambda i: (i, 0, 0)),
        compiler_params=pltpu.CompilerParams(
            dimension_semantics=("parallel",),
            vmem_limit_bytes=32 * 1024 * 1024),
    )(x, lng, lnb, w1, params["b1"].reshape(1, C), params["ln_out_g"],
      params["ln_out_b"], w2, params["b2"].reshape(1, C), wfc, bfc)

    return out_flat.reshape(B, N, O)                              # (b, n, 12)


# ----------------------------------------------------------------------------
# Pure-JAX reference (mirrors the PyTorch forward exactly) for correctness.
# ----------------------------------------------------------------------------
def reference_forward(x, params, T_k, control_str="NN"):
    HI = jax.lax.Precision.HIGHEST

    def ln_nc(v, g, b):
        mean = jnp.mean(v, axis=(2, 3), keepdims=True)
        var = jnp.mean((v - mean) ** 2, axis=(2, 3), keepdims=True)
        return (v - mean) / jnp.sqrt(var + LN_EPS) * g + b

    for ch, (g, b) in zip(control_str, params["ln_layers"]):
        assert ch == "N"
        x = jnp.transpose(ln_nc(jnp.transpose(x, (0, 2, 1, 3)), g, b), (0, 2, 1, 3))

    B, N, T_IN, C = x.shape
    TP = T_IN - T_k + 1
    y1 = jnp.zeros((B, N, TP, C), jnp.float32)
    for k in range(T_k):
        y1 = y1 + jnp.einsum("bnti,oi->bnto", x[:, :, k:k + TP, :],
                             params["w1"][:, :, 0, k], precision=HI)
    y1 = y1 + params["b1"]
    yln = jnp.transpose(
        ln_nc(jnp.transpose(y1, (0, 2, 1, 3)), params["ln_out_g"], params["ln_out_b"]),
        (0, 2, 1, 3))
    y2 = jnp.einsum("bnti,oi->bnto", yln, params["w2"][:, :, 0, 0],
                    precision=HI) + params["b2"]
    # PyTorch: x_t2 is NCHW-contiguous (b, c, n, t') -> reshape(b, n, -1)
    z = jnp.transpose(y2, (0, 3, 1, 2)).reshape(B, N, C * TP)
    return jnp.einsum("bnk,ok->bno", z, params["Wfc"], precision=HI) + params["bfc"]


def init_params(key, c, n, T_k, num_ln_layers):
    TP = 12 - T_k + 1
    ks = jax.random.split(key, 6)
    return {
        "ln_layers": [(jnp.ones((n, c), jnp.float32), jnp.zeros((n, c), jnp.float32))
                      for _ in range(num_ln_layers)],
        "w1": 0.1 * jax.random.normal(ks[0], (c, c, 1, T_k), jnp.float32),
        "b1": 0.1 * jax.random.normal(ks[1], (c,), jnp.float32),
        "ln_out_g": jnp.ones((n, c), jnp.float32),
        "ln_out_b": jnp.zeros((n, c), jnp.float32),
        "w2": 0.1 * jax.random.normal(ks[2], (c, c, 1, 1), jnp.float32),
        "b2": 0.1 * jax.random.normal(ks[3], (c,), jnp.float32),
        "Wfc": 0.1 * jax.random.normal(ks[4], (12, c * TP), jnp.float32),
        "bfc": 0.1 * jax.random.normal(ks[5], (12,), jnp.float32),
    }


if __name__ == "__main__":
    # Input time dim must be 12 so OutputLayer's fc (c * ((12 - T) + 1)) matches
    # the temporal-conv output length.
    B, N, T_IN, C = 2, 4, 12, 8      # batch, nodes, time, channels
    T_K = 3                          # time_input (temporal kernel width)
    CONTROL_STR = "NN"

    key = jax.random.PRNGKey(0)
    kx, kp = jax.random.split(key)
    x = jax.random.normal(kx, (B, N, T_IN, C), jnp.float32)
    params = init_params(kp, C, N, T_K, num_ln_layers=len(CONTROL_STR))

    out = tree_at_tcn_forward(x, params, CONTROL_STR)
    out = jax.block_until_ready(out)

    ref = reference_forward(x, params, T_K, CONTROL_STR)
    assert out.shape == (B, N, 12), out.shape
    max_err = float(jnp.max(jnp.abs(out - ref)))
    assert max_err < 1e-2, f"max abs error {max_err}"
    print("KERNEL_OK")
</pallas_src>

<mosaic_0001>
module attributes {stable_mosaic.version = 11 : i64} {
  func.func @_fused_kernel(%arg0: i32, %arg1: memref<1x4x12x8xf32, #tpu.memory_space<vmem>>, %arg2: memref<2x4x8xf32, #tpu.memory_space<vmem>>, %arg3: memref<2x4x8xf32, #tpu.memory_space<vmem>>, %arg4: memref<3x8x8xf32, #tpu.memory_space<vmem>>, %arg5: memref<1x8xf32, #tpu.memory_space<vmem>>, %arg6: memref<4x8xf32, #tpu.memory_space<vmem>>, %arg7: memref<4x8xf32, #tpu.memory_space<vmem>>, %arg8: memref<8x8xf32, #tpu.memory_space<vmem>>, %arg9: memref<1x8xf32, #tpu.memory_space<vmem>>, %arg10: memref<8x40x48xf32, #tpu.memory_space<vmem>>, %arg11: memref<1x48xf32, #tpu.memory_space<vmem>>, %arg12: memref<1x1x48xf32, #tpu.memory_space<vmem>>) attributes {dimension_semantics = [#tpu.dimension_semantics<parallel>], iteration_bounds = array<i64: 2>, scalar_prefetch = 0 : i64, scratch_operands = 0 : i64, tpu.core_type = #tpu.core_type<tc>, window_params = [{transform_indices = @transform_0, window_bounds = array<i64: 1, 4, 12, 8>}, {pipeline_mode = #tpu.pipeline_mode<synchronous>, transform_indices = @transform_1, window_bounds = array<i64: 2, 4, 8>}, {pipeline_mode = #tpu.pipeline_mode<synchronous>, transform_indices = @transform_2, window_bounds = array<i64: 2, 4, 8>}, {pipeline_mode = #tpu.pipeline_mode<synchronous>, transform_indices = @transform_3, window_bounds = array<i64: 3, 8, 8>}, {pipeline_mode = #tpu.pipeline_mode<synchronous>, transform_indices = @transform_4, window_bounds = array<i64: 1, 8>}, {pipeline_mode = #tpu.pipeline_mode<synchronous>, transform_indices = @transform_5, window_bounds = array<i64: 4, 8>}, {pipeline_mode = #tpu.pipeline_mode<synchronous>, transform_indices = @transform_6, window_bounds = array<i64: 4, 8>}, {pipeline_mode = #tpu.pipeline_mode<synchronous>, transform_indices = @transform_7, window_bounds = array<i64: 8, 8>}, {pipeline_mode = #tpu.pipeline_mode<synchronous>, transform_indices = @transform_8, window_bounds = array<i64: 1, 8>}, {pipeline_mode = #tpu.pipeline_mode<synchronous>, transform_indices = @transform_9, window_bounds = array<i64: 8, 40, 48>}, {pipeline_mode = #tpu.pipeline_mode<synchronous>, transform_indices = @transform_10, window_bounds = array<i64: 1, 48>}, {transform_indices = @transform_11, window_bounds = array<i64: 1, 1, 48>}]} {
    %c0 = arith.constant 0 : index
    %c0_0 = arith.constant 0 : index
    %c0_1 = arith.constant 0 : index
    %c0_2 = arith.constant 0 : index
    %0 = vector.load %arg1[%c0, %c0_0, %c0_1, %c0_2] : memref<1x4x12x8xf32, #tpu.memory_space<vmem>>, vector<1x4x12x8xf32>
    %1 = vector.shape_cast %0 : vector<1x4x12x8xf32> to vector<4x12x8xf32>
    %c0_3 = arith.constant 0 : index
    %c0_4 = arith.constant 0 : index
    %c0_5 = arith.constant 0 : index
    %2 = vector.load %arg2[%c0_3, %c0_4, %c0_5] : memref<2x4x8xf32, #tpu.memory_space<vmem>>, vector<1x4x8xf32>
    %3 = vector.shape_cast %2 : vector<1x4x8xf32> to vector<4x8xf32>
    %c0_6 = arith.constant 0 : index
    %c0_7 = arith.constant 0 : index
    %c0_8 = arith.constant 0 : index
    %4 = vector.load %arg3[%c0_6, %c0_7, %c0_8] : memref<2x4x8xf32, #tpu.memory_space<vmem>>, vector<1x4x8xf32>
    %5 = vector.shape_cast %4 : vector<1x4x8xf32> to vector<4x8xf32>
    %cst = arith.constant dense<0.000000e+00> : vector<4x12xf32>
    %6 = vector.multi_reduction <add>, %1, %cst [2] : vector<4x12x8xf32> to vector<4x12xf32>
    %7 = vector.shape_cast %6 : vector<4x12xf32> to vector<4x12x1xf32>
    %cst_9 = arith.constant 8.000000e+00 : f32
    %8 = vector.broadcast %cst_9 : f32 to vector<4x12x1xf32>
    %9 = arith.divf %7, %8 : vector<4x12x1xf32>
    %cst_10 = arith.constant dense<0.000000e+00> : vector<12x1xf32>
    %10 = vector.multi_reduction <add>, %9, %cst_10 [0] : vector<4x12x1xf32> to vector<12x1xf32>
    %11 = vector.shape_cast %10 : vector<12x1xf32> to vector<1x12x1xf32>
    %cst_11 = arith.constant 4.000000e+00 : f32
    %12 = vector.broadcast %cst_11 : f32 to vector<1x12x1xf32>
    %13 = arith.divf %11, %12 : vector<1x12x1xf32>
    %14 = vector.broadcast %13 : vector<1x12x1xf32> to vector<4x12x8xf32>
    %15 = arith.subf %1, %14 : vector<4x12x8xf32>
    %16 = arith.mulf %15, %15 : vector<4x12x8xf32>
    %cst_12 = arith.constant dense<0.000000e+00> : vector<4x12xf32>
    %17 = vector.multi_reduction <add>, %16, %cst_12 [2] : vector<4x12x8xf32> to vector<4x12xf32>
    %18 = vector.shape_cast %17 : vector<4x12xf32> to vector<4x12x1xf32>
    %cst_13 = arith.constant 8.000000e+00 : f32
    %19 = vector.broadcast %cst_13 : f32 to vector<4x12x1xf32>
    %20 = arith.divf %18, %19 : vector<4x12x1xf32>
    %cst_14 = arith.constant dense<0.000000e+00> : vector<12x1xf32>
    %21 = vector.multi_reduction <add>, %20, %cst_14 [0] : vector<4x12x1xf32> to vector<12x1xf32>
    %22 = vector.shape_cast %21 : vector<12x1xf32> to vector<1x12x1xf32>
    %cst_15 = arith.constant 4.000000e+00 : f32
    %23 = vector.broadcast %cst_15 : f32 to vector<1x12x1xf32>
    %24 = arith.divf %22, %23 : vector<1x12x1xf32>
    %cst_16 = arith.constant 9.99999974E-6 : f32
    %25 = vector.broadcast %cst_16 : f32 to vector<1x12x1xf32>
    %26 = arith.addf %24, %25 : vector<1x12x1xf32>
    %27 = math.rsqrt %26 : vector<1x12x1xf32>
    %28 = vector.broadcast %27 : vector<1x12x1xf32> to vector<4x12x8xf32>
    %29 = arith.mulf %15, %28 : vector<4x12x8xf32>
    %30 = vector.shape_cast %3 : vector<4x8xf32> to vector<4x1x8xf32>
    %31 = vector.broadcast %30 : vector<4x1x8xf32> to vector<4x12x8xf32>
    %32 = arith.mulf %29, %31 : vector<4x12x8xf32>
    %33 = vector.shape_cast %5 : vector<4x8xf32> to vector<4x1x8xf32>
    %34 = vector.broadcast %33 : vector<4x1x8xf32> to vector<4x12x8xf32>
    %35 = arith.addf %32, %34 : vector<4x12x8xf32>
    %c1 = arith.constant 1 : index
    %c0_17 = arith.constant 0 : index
    %c0_18 = arith.constant 0 : index
    %36 = vector.load %arg2[%c1, %c0_17, %c0_18] : memref<2x4x8xf32, #tpu.memory_space<vmem>>, vector<1x4x8xf32>
    %37 = vector.shape_cast %36 : vector<1x4x8xf32> to vector<4x8xf32>
    %c1_19 = arith.constant 1 : index
    %c0_20 = arith.constant 0 : index
    %c0_21 = arith.constant 0 : index
    %38 = vector.load %arg3[%c1_19, %c0_20, %c0_21] : memref<2x4x8xf32, #tpu.memory_space<vmem>>, vector<1x4x8xf32>
    %39 = vector.shape_cast %38 : vector<1x4x8xf32> to vector<4x8xf32>
    %cst_22 = arith.constant dense<0.000000e+00> : vector<4x12xf32>
    %40 = vector.multi_reduction <add>, %35, %cst_22 [2] : vector<4x12x8xf32> to vector<4x12xf32>
    %41 = vector.shape_cast %40 : vector<4x12xf32> to vector<4x12x1xf32>
    %cst_23 = arith.constant 8.000000e+00 : f32
    %42 = vector.broadcast %cst_23 : f32 to vector<4x12x1xf32>
    %43 = arith.divf %41, %42 : vector<4x12x1xf32>
    %cst_24 = arith.constant dense<0.000000e+00> : vector<12x1xf32>
    %44 = vector.multi_reduction <add>, %43, %cst_24 [0] : vector<4x12x1xf32> to vector<12x1xf32>
    %45 = vector.shape_cast %44 : vector<12x1xf32> to vector<1x12x1xf32>
    %cst_25 = arith.constant 4.000000e+00 : f32
    %46 = vector.broadcast %cst_25 : f32 to vector<1x12x1xf32>
    %47 = arith.divf %45, %46 : vector<1x12x1xf32>
    %48 = vector.broadcast %47 : vector<1x12x1xf32> to vector<4x12x8xf32>
    %49 = arith.subf %35, %48 : vector<4x12x8xf32>
    %50 = arith.mulf %49, %49 : vector<4x12x8xf32>
    %cst_26 = arith.constant dense<0.000000e+00> : vector<4x12xf32>
    %51 = vector.multi_reduction <add>, %50, %cst_26 [2] : vector<4x12x8xf32> to vector<4x12xf32>
    %52 = vector.shape_cast %51 : vector<4x12xf32> to vector<4x12x1xf32>
    %cst_27 = arith.constant 8.000000e+00 : f32
    %53 = vector.broadcast %cst_27 : f32 to vector<4x12x1xf32>
    %54 = arith.divf %52, %53 : vector<4x12x1xf32>
    %cst_28 = arith.constant dense<0.000000e+00> : vector<12x1xf32>
    %55 = vector.multi_reduction <add>, %54, %cst_28 [0] : vector<4x12x1xf32> to vector<12x1xf32>
    %56 = vector.shape_cast %55 : vector<12x1xf32> to vector<1x12x1xf32>
    %cst_29 = arith.constant 4.000000e+00 : f32
    %57 = vector.broadcast %cst_29 : f32 to vector<1x12x1xf32>
    %58 = arith.divf %56, %57 : vector<1x12x1xf32>
    %cst_30 = arith.constant 9.99999974E-6 : f32
    %59 = vector.broadcast %cst_30 : f32 to vector<1x12x1xf32>
    %60 = arith.addf %58, %59 : vector<1x12x1xf32>
    %61 = math.rsqrt %60 : vector<1x12x1xf32>
    %62 = vector.broadcast %61 : vector<1x12x1xf32> to vector<4x12x8xf32>
    %63 = arith.mulf %49, %62 : vector<4x12x8xf32>
    %64 = vector.shape_cast %37 : vector<4x8xf32> to vector<4x1x8xf32>
    %65 = vector.broadcast %64 : vector<4x1x8xf32> to vector<4x12x8xf32>
    %66 = arith.mulf %63, %65 : vector<4x12x8xf32>
    %67 = vector.shape_cast %39 : vector<4x8xf32> to vector<4x1x8xf32>
    %68 = vector.broadcast %67 : vector<4x1x8xf32> to vector<4x12x8xf32>
    %69 = arith.addf %66, %68 : vector<4x12x8xf32>
    %cst_31 = arith.constant 0.000000e+00 : f32
    %70 = vector.broadcast %cst_31 : f32 to vector<4x10x8xf32>
    %71 = vector.extract_strided_slice %69 {offsets = [0, 0, 0], sizes = [4, 10, 8], strides = [1, 1, 1]} : vector<4x12x8xf32> to vector<4x10x8xf32>
    %72 = vector.shape_cast %71 : vector<4x10x8xf32> to vector<40x8xf32>
    %c0_32 = arith.constant 0 : index
    %c0_33 = arith.constant 0 : index
    %c0_34 = arith.constant 0 : index
    %73 = vector.load %arg4[%c0_32, %c0_33, %c0_34] : memref<3x8x8xf32, #tpu.memory_space<vmem>>, vector<1x8x8xf32>
    %74 = vector.shape_cast %73 : vector<1x8x8xf32> to vector<8x8xf32>
    %cst_35 = arith.constant dense<0.000000e+00> : vector<40x8xf32>
    %75 = tpu.matmul %72, %74, %cst_35 {dimension_numbers = #tpu.dot_dimension_numbers<[1], [0], [0], [1], [0, 0, 1, 1], [], []>} : vector<40x8xf32>, vector<8x8xf32>, vector<40x8xf32> -> vector<40x8xf32>
    %76 = vector.shape_cast %75 : vector<40x8xf32> to vector<4x10x8xf32>
    %77 = arith.addf %70, %76 : vector<4x10x8xf32>
    %78 = vector.extract_strided_slice %69 {offsets = [0, 1, 0], sizes = [4, 10, 8], strides = [1, 1, 1]} : vector<4x12x8xf32> to vector<4x10x8xf32>
    %79 = vector.shape_cast %78 : vector<4x10x8xf32> to vector<40x8xf32>
    %c1_36 = arith.constant 1 : index
    %c0_37 = arith.constant 0 : index
    %c0_38 = arith.constant 0 : index
    %80 = vector.load %arg4[%c1_36, %c0_37, %c0_38] : memref<3x8x8xf32, #tpu.memory_space<vmem>>, vector<1x8x8xf32>
    %81 = vector.shape_cast %80 : vector<1x8x8xf32> to vector<8x8xf32>
    %cst_39 = arith.constant dense<0.000000e+00> : vector<40x8xf32>
    %82 = tpu.matmul %79, %81, %cst_39 {dimension_numbers = #tpu.dot_dimension_numbers<[1], [0], [0], [1], [0, 0, 1, 1], [], []>} : vector<40x8xf32>, vector<8x8xf32>, vector<40x8xf32> -> vector<40x8xf32>
    %83 = vector.shape_cast %82 : vector<40x8xf32> to vector<4x10x8xf32>
    %84 = arith.addf %77, %83 : vector<4x10x8xf32>
    %85 = vector.extract_strided_slice %69 {offsets = [0, 2, 0], sizes = [4, 10, 8], strides = [1, 1, 1]} : vector<4x12x8xf32> to vector<4x10x8xf32>
    %86 = vector.shape_cast %85 : vector<4x10x8xf32> to vector<40x8xf32>
    %c2 = arith.constant 2 : index
    %c0_40 = arith.constant 0 : index
    %c0_41 = arith.constant 0 : index
    %87 = vector.load %arg4[%c2, %c0_40, %c0_41] : memref<3x8x8xf32, #tpu.memory_space<vmem>>, vector<1x8x8xf32>
    %88 = vector.shape_cast %87 : vector<1x8x8xf32> to vector<8x8xf32>
    %cst_42 = arith.constant dense<0.000000e+00> : vector<40x8xf32>
    %89 = tpu.matmul %86, %88, %cst_42 {dimension_numbers = #tpu.dot_dimension_numbers<[1], [0], [0], [1], [0, 0, 1, 1], [], []>} : vector<40x8xf32>, vector<8x8xf32>, vector<40x8xf32> -> vector<40x8xf32>
    %90 = vector.shape_cast %89 : vector<40x8xf32> to vector<4x10x8xf32>
    %91 = arith.addf %84, %90 : vector<4x10x8xf32>
    %c0_43 = arith.constant 0 : index
    %c0_44 = arith.constant 0 : index
    %92 = vector.load %arg5[%c0_43, %c0_44] : memref<1x8xf32, #tpu.memory_space<vmem>>, vector<1x8xf32>
    %93 = vector.shape_cast %92 : vector<1x8xf32> to vector<1x1x8xf32>
    %94 = vector.broadcast %93 : vector<1x1x8xf32> to vector<4x10x8xf32>
    %95 = arith.addf %91, %94 : vector<4x10x8xf32>
    %c0_45 = arith.constant 0 : index
    %c0_46 = arith.constant 0 : index
    %96 = vector.load %arg6[%c0_45, %c0_46] : memref<4x8xf32, #tpu.memory_space<vmem>>, vector<4x8xf32>
    %c0_47 = arith.constant 0 : index
    %c0_48 = arith.constant 0 : index
    %97 = vector.load %arg7[%c0_47, %c0_48] : memref<4x8xf32, #tpu.memory_space<vmem>>, vector<4x8xf32>
    %cst_49 = arith.constant dense<0.000000e+00> : vector<4x10xf32>
    %98 = vector.multi_reduction <add>, %95, %cst_49 [2] : vector<4x10x8xf32> to vector<4x10xf32>
    %99 = vector.shape_cast %98 : vector<4x10xf32> to vector<4x10x1xf32>
    %cst_50 = arith.constant 8.000000e+00 : f32
    %100 = vector.broadcast %cst_50 : f32 to vector<4x10x1xf32>
    %101 = arith.divf %99, %100 : vector<4x10x1xf32>
    %cst_51 = arith.constant dense<0.000000e+00> : vector<10x1xf32>
    %102 = vector.multi_reduction <add>, %101, %cst_51 [0] : vector<4x10x1xf32> to vector<10x1xf32>
    %103 = vector.shape_cast %102 : vector<10x1xf32> to vector<1x10x1xf32>
    %cst_52 = arith.constant 4.000000e+00 : f32
    %104 = vector.broadcast %cst_52 : f32 to vector<1x10x1xf32>
    %105 = arith.divf %103, %104 : vector<1x10x1xf32>
    %106 = vector.broadcast %105 : vector<1x10x1xf32> to vector<4x10x8xf32>
    %107 = arith.subf %95, %106 : vector<4x10x8xf32>
    %108 = arith.mulf %107, %107 : vector<4x10x8xf32>
    %cst_53 = arith.constant dense<0.000000e+00> : vector<4x10xf32>
    %109 = vector.multi_reduction <add>, %108, %cst_53 [2] : vector<4x10x8xf32> to vector<4x10xf32>
    %110 = vector.shape_cast %109 : vector<4x10xf32> to vector<4x10x1xf32>
    %cst_54 = arith.constant 8.000000e+00 : f32
    %111 = vector.broadcast %cst_54 : f32 to vector<4x10x1xf32>
    %112 = arith.divf %110, %111 : vector<4x10x1xf32>
    %cst_55 = arith.constant dense<0.000000e+00> : vector<10x1xf32>
    %113 = vector.multi_reduction <add>, %112, %cst_55 [0] : vector<4x10x1xf32> to vector<10x1xf32>
    %114 = vector.shape_cast %113 : vector<10x1xf32> to vector<1x10x1xf32>
    %cst_56 = arith.constant 4.000000e+00 : f32
    %115 = vector.broadcast %cst_56 : f32 to vector<1x10x1xf32>
    %116 = arith.divf %114, %115 : vector<1x10x1xf32>
    %cst_57 = arith.constant 9.99999974E-6 : f32
    %117 = vector.broadcast %cst_57 : f32 to vector<1x10x1xf32>
    %118 = arith.addf %116, %117 : vector<1x10x1xf32>
    %119 = math.rsqrt %118 : vector<1x10x1xf32>
    %120 = vector.broadcast %119 : vector<1x10x1xf32> to vector<4x10x8xf32>
    %121 = arith.mulf %107, %120 : vector<4x10x8xf32>
    %122 = vector.shape_cast %96 : vector<4x8xf32> to vector<4x1x8xf32>
    %123 = vector.broadcast %122 : vector<4x1x8xf32> to vector<4x10x8xf32>
    %124 = arith.mulf %121, %123 : vector<4x10x8xf32>
    %125 = vector.shape_cast %97 : vector<4x8xf32> to vector<4x1x8xf32>
    %126 = vector.broadcast %125 : vector<4x1x8xf32> to vector<4x10x8xf32>
    %127 = arith.addf %124, %126 : vector<4x10x8xf32>
    %128 = vector.shape_cast %127 : vector<4x10x8xf32> to vector<40x8xf32>
    %c0_58 = arith.constant 0 : index
    %c0_59 = arith.constant 0 : index
    %129 = vector.load %arg8[%c0_58, %c0_59] : memref<8x8xf32, #tpu.memory_space<vmem>>, vector<8x8xf32>
    %cst_60 = arith.constant dense<0.000000e+00> : vector<40x8xf32>
    %130 = tpu.matmul %128, %129, %cst_60 {dimension_numbers = #tpu.dot_dimension_numbers<[1], [0], [0], [1], [0, 0, 1, 1], [], []>} : vector<40x8xf32>, vector<8x8xf32>, vector<40x8xf32> -> vector<40x8xf32>
    %c0_61 = arith.constant 0 : index
    %c0_62 = arith.constant 0 : index
    %131 = vector.load %arg9[%c0_61, %c0_62] : memref<1x8xf32, #tpu.memory_space<vmem>>, vector<1x8xf32>
    %132 = vector.broadcast %131 : vector<1x8xf32> to vector<40x8xf32>
    %133 = arith.addf %130, %132 : vector<40x8xf32>
    %c0_63 = arith.constant 0 : index
    %c0_64 = arith.constant 0 : index
    %134 = vector.load %arg11[%c0_63, %c0_64] : memref<1x48xf32, #tpu.memory_space<vmem>>, vector<1x48xf32>
    %135 = vector.extract_strided_slice %133 {offsets = [0, 0], sizes = [40, 1], strides = [1, 1]} : vector<40x8xf32> to vector<40x1xf32>
    %c0_65 = arith.constant 0 : index
    %c0_66 = arith.constant 0 : index
    %c0_67 = arith.constant 0 : index
    %136 = vector.load %arg10[%c0_65, %c0_66, %c0_67] : memref<8x40x48xf32, #tpu.memory_space<vmem>>, vector<1x40x48xf32>
    %137 = vector.shape_cast %136 : vector<1x40x48xf32> to vector<40x48xf32>
    %138 = vector.broadcast %135 : vector<40x1xf32> to vector<40x48xf32>
    %139 = arith.mulf %138, %137 : vector<40x48xf32>
    %cst_68 = arith.constant dense<0.000000e+00> : vector<48xf32>
    %140 = vector.multi_reduction <add>, %139, %cst_68 [0] : vector<40x48xf32> to vector<48xf32>
    %141 = vector.shape_cast %140 : vector<48xf32> to vector<1x48xf32>
    %142 = arith.addf %134, %141 : vector<1x48xf32>
    %143 = vector.extract_strided_slice %133 {offsets = [0, 1], sizes = [40, 1], strides = [1, 1]} : vector<40x8xf32> to vector<40x1xf32>
    %c1_69 = arith.constant 1 : index
    %c0_70 = arith.constant 0 : index
    %c0_71 = arith.constant 0 : index
    %144 = vector.load %arg10[%c1_69, %c0_70, %c0_71] : memref<8x40x48xf32, #tpu.memory_space<vmem>>, vector<1x40x48xf32>
    %145 = vector.shape_cast %144 : vector<1x40x48xf32> to vector<40x48xf32>
    %146 = vector.broadcast %143 : vector<40x1xf32> to vector<40x48xf32>
    %147 = arith.mulf %146, %145 : vector<40x48xf32>
    %cst_72 = arith.constant dense<0.000000e+00> : vector<48xf32>
    %148 = vector.multi_reduction <add>, %147, %cst_72 [0] : vector<40x48xf32> to vector<48xf32>
    %149 = vector.shape_cast %148 : vector<48xf32> to vector<1x48xf32>
    %150 = arith.addf %142, %149 : vector<1x48xf32>
    %151 = vector.extract_strided_slice %133 {offsets = [0, 2], sizes = [40, 1], strides = [1, 1]} : vector<40x8xf32> to vector<40x1xf32>
    %c2_73 = arith.constant 2 : index
    %c0_74 = arith.constant 0 : index
    %c0_75 = arith.constant 0 : index
    %152 = vector.load %arg10[%c2_73, %c0_74, %c0_75] : memref<8x40x48xf32, #tpu.memory_space<vmem>>, vector<1x40x48xf32>
    %153 = vector.shape_cast %152 : vector<1x40x48xf32> to vector<40x48xf32>
    %154 = vector.broadcast %151 : vector<40x1xf32> to vector<40x48xf32>
    %155 = arith.mulf %154, %153 : vector<40x48xf32>
    %cst_76 = arith.constant dense<0.000000e+00> : vector<48xf32>
    %156 = vector.multi_reduction <add>, %155, %cst_76 [0] : vector<40x48xf32> to vector<48xf32>
    %157 = vector.shape_cast %156 : vector<48xf32> to vector<1x48xf32>
    %158 = arith.addf %150, %157 : vector<1x48xf32>
    %159 = vector.extract_strided_slice %133 {offsets = [0, 3], sizes = [40, 1], strides = [1, 1]} : vector<40x8xf32> to vector<40x1xf32>
    %c3 = arith.constant 3 : index
    %c0_77 = arith.constant 0 : index
    %c0_78 = arith.constant 0 : index
    %160 = vector.load %arg10[%c3, %c0_77, %c0_78] : memref<8x40x48xf32, #tpu.memory_space<vmem>>, vector<1x40x48xf32>
    %161 = vector.shape_cast %160 : vector<1x40x48xf32> to vector<40x48xf32>
    %162 = vector.broadcast %159 : vector<40x1xf32> to vector<40x48xf32>
    %163 = arith.mulf %162, %161 : vector<40x48xf32>
    %cst_79 = arith.constant dense<0.000000e+00> : vector<48xf32>
    %164 = vector.multi_reduction <add>, %163, %cst_79 [0] : vector<40x48xf32> to vector<48xf32>
    %165 = vector.shape_cast %164 : vector<48xf32> to vector<1x48xf32>
    %166 = arith.addf %158, %165 : vector<1x48xf32>
    %167 = vector.extract_strided_slice %133 {offsets = [0, 4], sizes = [40, 1], strides = [1, 1]} : vector<40x8xf32> to vector<40x1xf32>
    %c4 = arith.constant 4 : index
    %c0_80 = arith.constant 0 : index
    %c0_81 = arith.constant 0 : index
    %168 = vector.load %arg10[%c4, %c0_80, %c0_81] : memref<8x40x48xf32, #tpu.memory_space<vmem>>, vector<1x40x48xf32>
    %169 = vector.shape_cast %168 : vector<1x40x48xf32> to vector<40x48xf32>
    %170 = vector.broadcast %167 : vector<40x1xf32> to vector<40x48xf32>
    %171 = arith.mulf %170, %169 : vector<40x48xf32>
    %cst_82 = arith.constant dense<0.000000e+00> : vector<48xf32>
    %172 = vector.multi_reduction <add>, %171, %cst_82 [0] : vector<40x48xf32> to vector<48xf32>
    %173 = vector.shape_cast %172 : vector<48xf32> to vector<1x48xf32>
    %174 = arith.addf %166, %173 : vector<1x48xf32>
    %175 = vector.extract_strided_slice %133 {offsets = [0, 5], sizes = [40, 1], strides = [1, 1]} : vector<40x8xf32> to vector<40x1xf32>
    %c5 = arith.constant 5 : index
    %c0_83 = arith.constant 0 : index
    %c0_84 = arith.constant 0 : index
    %176 = vector.load %arg10[%c5, %c0_83, %c0_84] : memref<8x40x48xf32, #tpu.memory_space<vmem>>, vector<1x40x48xf32>
    %177 = vector.shape_cast %176 : vector<1x40x48xf32> to vector<40x48xf32>
    %178 = vector.broadcast %175 : vector<40x1xf32> to vector<40x48xf32>
    %179 = arith.mulf %178, %177 : vector<40x48xf32>
    %cst_85 = arith.constant dense<0.000000e+00> : vector<48xf32>
    %180 = vector.multi_reduction <add>, %179, %cst_85 [0] : vector<40x48xf32> to vector<48xf32>
    %181 = vector.shape_cast %180 : vector<48xf32> to vector<1x48xf32>
    %182 = arith.addf %174, %181 : vector<1x48xf32>
    %183 = vector.extract_strided_slice %133 {offsets = [0, 6], sizes = [40, 1], strides = [1, 1]} : vector<40x8xf32> to vector<40x1xf32>
    %c6 = arith.constant 6 : index
    %c0_86 = arith.constant 0 : index
    %c0_87 = arith.constant 0 : index
    %184 = vector.load %arg10[%c6, %c0_86, %c0_87] : memref<8x40x48xf32, #tpu.memory_space<vmem>>, vector<1x40x48xf32>
    %185 = vector.shape_cast %184 : vector<1x40x48xf32> to vector<40x48xf32>
    %186 = vector.broadcast %183 : vector<40x1xf32> to vector<40x48xf32>
    %187 = arith.mulf %186, %185 : vector<40x48xf32>
    %cst_88 = arith.constant dense<0.000000e+00> : vector<48xf32>
    %188 = vector.multi_reduction <add>, %187, %cst_88 [0] : vector<40x48xf32> to vector<48xf32>
    %189 = vector.shape_cast %188 : vector<48xf32> to vector<1x48xf32>
    %190 = arith.addf %182, %189 : vector<1x48xf32>
    %191 = vector.extract_strided_slice %133 {offsets = [0, 7], sizes = [40, 1], strides = [1, 1]} : vector<40x8xf32> to vector<40x1xf32>
    %c7 = arith.constant 7 : index
    %c0_89 = arith.constant 0 : index
    %c0_90 = arith.constant 0 : index
    %192 = vector.load %arg10[%c7, %c0_89, %c0_90] : memref<8x40x48xf32, #tpu.memory_space<vmem>>, vector<1x40x48xf32>
    %193 = vector.shape_cast %192 : vector<1x40x48xf32> to vector<40x48xf32>
    %194 = vector.broadcast %191 : vector<40x1xf32> to vector<40x48xf32>
    %195 = arith.mulf %194, %193 : vector<40x48xf32>
    %cst_91 = arith.constant dense<0.000000e+00> : vector<48xf32>
    %196 = vector.multi_reduction <add>, %195, %cst_91 [0] : vector<40x48xf32> to vector<48xf32>
    %197 = vector.shape_cast %196 : vector<48xf32> to vector<1x48xf32>
    %198 = arith.addf %190, %197 : vector<1x48xf32>
    %199 = vector.shape_cast %198 : vector<1x48xf32> to vector<1x1x48xf32>
    %c0_92 = arith.constant 0 : index
    %c0_93 = arith.constant 0 : index
    %c0_94 = arith.constant 0 : index
    %200 = vector.load %arg12[%c0_92, %c0_93, %c0_94] : memref<1x1x48xf32, #tpu.memory_space<vmem>>, vector<1x1x48xf32>
    tpu.vector_store %arg12[%c0_92, %c0_93, %c0_94], %199 {strides = array<i32>} : memref<1x1x48xf32, #tpu.memory_space<vmem>>, vector<1x1x48xf32>,
    return
  }
  func.func @transform_0(%arg0: i32) -> (i32, i32, i32, i32) {
    %c0_i32 = arith.constant 0 : i32
    %c0_i32_0 = arith.constant 0 : i32
    %c0_i32_1 = arith.constant 0 : i32
    %c0_i32_2 = arith.constant 0 : i32
    return %arg0, %c0_i32, %c0_i32_0, %c0_i32_1 : i32, i32, i32, i32
  }
  func.func @transform_1(%arg0: i32) -> (i32, i32, i32) {
    %c0_i32 = arith.constant 0 : i32
    %c0_i32_0 = arith.constant 0 : i32
    %c0_i32_1 = arith.constant 0 : i32
    %c0_i32_2 = arith.constant 0 : i32
    return %c0_i32, %c0_i32_0, %c0_i32_1 : i32, i32, i32
  }
  func.func @transform_2(%arg0: i32) -> (i32, i32, i32) {
    %c0_i32 = arith.constant 0 : i32
    %c0_i32_0 = arith.constant 0 : i32
    %c0_i32_1 = arith.constant 0 : i32
    %c0_i32_2 = arith.constant 0 : i32
    return %c0_i32, %c0_i32_0, %c0_i32_1 : i32, i32, i32
  }
  func.func @transform_3(%arg0: i32) -> (i32, i32, i32) {
    %c0_i32 = arith.constant 0 : i32
    %c0_i32_0 = arith.constant 0 : i32
    %c0_i32_1 = arith.constant 0 : i32
    %c0_i32_2 = arith.constant 0 : i32
    return %c0_i32, %c0_i32_0, %c0_i32_1 : i32, i32, i32
  }
  func.func @transform_4(%arg0: i32) -> (i32, i32) {
    %c0_i32 = arith.constant 0 : i32
    %c0_i32_0 = arith.constant 0 : i32
    %c0_i32_1 = arith.constant 0 : i32
    return %c0_i32, %c0_i32_0 : i32, i32
  }
  func.func @transform_5(%arg0: i32) -> (i32, i32) {
    %c0_i32 = arith.constant 0 : i32
    %c0_i32_0 = arith.constant 0 : i32
    %c0_i32_1 = arith.constant 0 : i32
    return %c0_i32, %c0_i32_0 : i32, i32
  }
  func.func @transform_6(%arg0: i32) -> (i32, i32) {
    %c0_i32 = arith.constant 0 : i32
    %c0_i32_0 = arith.constant 0 : i32
    %c0_i32_1 = arith.constant 0 : i32
    return %c0_i32, %c0_i32_0 : i32, i32
  }
  func.func @transform_7(%arg0: i32) -> (i32, i32) {
    %c0_i32 = arith.constant 0 : i32
    %c0_i32_0 = arith.constant 0 : i32
    %c0_i32_1 = arith.constant 0 : i32
    return %c0_i32, %c0_i32_0 : i32, i32
  }
  func.func @transform_8(%arg0: i32) -> (i32, i32) {
    %c0_i32 = arith.constant 0 : i32
    %c0_i32_0 = arith.constant 0 : i32
    %c0_i32_1 = arith.constant 0 : i32
    return %c0_i32, %c0_i32_0 : i32, i32
  }
  func.func @transform_9(%arg0: i32) -> (i32, i32, i32) {
    %c0_i32 = arith.constant 0 : i32
    %c0_i32_0 = arith.constant 0 : i32
    %c0_i32_1 = arith.constant 0 : i32
    %c0_i32_2 = arith.constant 0 : i32
    return %c0_i32, %c0_i32_0, %c0_i32_1 : i32, i32, i32
  }
  func.func @transform_10(%arg0: i32) -> (i32, i32) {
    %c0_i32 = arith.constant 0 : i32
    %c0_i32_0 = arith.constant 0 : i32
    %c0_i32_1 = arith.constant 0 : i32
    return %c0_i32, %c0_i32_0 : i32, i32
  }
  func.func @transform_11(%arg0: i32) -> (i32, i32, i32) {
    %c0_i32 = arith.constant 0 : i32
    %c0_i32_0 = arith.constant 0 : i32
    %c0_i32_1 = arith.constant 0 : i32
    return %arg0, %c0_i32, %c0_i32_0 : i32, i32, i32
  }
}

</mosaic_0001>

<llo_original>
// kernel: tpu_custom_call.1
$region0: #{tpu_custom_call.1}
  #allocation0 [shape = 'u32[]', space=smem, size = 0x4, offset = 0x4, fixed_abs, tag = 'smem constant byte address 0x4 - core index']
  #allocation1 [shape = 'u32[72,128]{1,0:T(1,128)}', space=vmem, size = 0x9000, scoped, tag = 'internal scratch']
  %s0 = inlined_call_operand.vmem [shape: f32[2,4,12,8], index: 0, kind: input, shape index: {}]
  %s1 = inlined_call_operand.vmem [shape: f32[2,4,8], index: 1, kind: input, shape index: {}]
  %s2 = inlined_call_operand.vmem [shape: f32[2,4,8], index: 2, kind: input, shape index: {}]
  %s3 = inlined_call_operand.vmem [shape: f32[3,8,8], index: 3, kind: input, shape index: {}]
  %s4 = inlined_call_operand.vmem [shape: f32[1,8], index: 4, kind: input, shape index: {}]
  %s5 = inlined_call_operand.vmem [shape: f32[4,8], index: 5, kind: input, shape index: {}]
  %s6 = inlined_call_operand.vmem [shape: f32[4,8], index: 6, kind: input, shape index: {}]
  %s7 = inlined_call_operand.vmem [shape: f32[8,8], index: 7, kind: input, shape index: {}]
  %s8 = inlined_call_operand.vmem [shape: f32[1,8], index: 8, kind: input, shape index: {}]
  %s9 = inlined_call_operand.hbm [shape: f32[8,40,48], index: 9, kind: input, shape index: {}]
  %s10 = inlined_call_operand.vmem [shape: f32[1,48], index: 10, kind: input, shape index: {}]
  %s11 = inlined_call_operand.hbm [shape: f32[2,1,48], index: 11, kind: output, shape index: {}]
  %s12 = sld [smem:[#allocation0]]
  $region81: #{tpu_custom_call.1} parent=0
    _
  %s14 = ssub.s32 1, %s12
  %s15 = scalar_select 0, %s14, %s12
  $region1: #{tpu_custom_call.1} parent=0
    #allocation2 [shape = 'u8[163840]{0}', space=vmem, size = 0x28000, scoped, tag = 'input window, operand 9, single buffered']
    #allocation3 [shape = 's32[2]{0}', space=sflag, size = 0x8, scoped, tag = 'scoped memory for tpu_custom_call.1']
    #allocation4 [shape = 's32[2]{0}', space=sflag, size = 0x8, scoped, tag = 'scoped memory for tpu_custom_call.1']
    #allocation5 [shape = 'u8[1024]{0}', space=vmem, size = 0x400, scoped, tag = 'output window, operand 0']
    %16 = vsyncpa [#allocation3], 0
    %17 = vsyncpa [#allocation4], 0
    %s18 = scalar_lea.sflag [#allocation4], 1
    %19 = vsyncpa %s18, 0
    loop: start=0, step=1, limit=4
    $region2: #{tpu_custom_call.1} parent=1 // loop_pre_header
      _
    $region3: #{tpu_custom_call.1} parent=1 // loop_header
      %s21 = sphi 0, %s25
      %p22 = scmp.ge.s32.totalorder %s21, 4
      %s31 = sphi 0, %s33
      %s34 = sphi 0, %s31
      %s35 = sphi 0, %s34
      %s51 = sphi 0, %s35
      %s55 = sphi 0, %s55
      %s57 = sphi 0, %s55
      %s58 = sphi 0, %s57
      %s72 = sphi 0, %s58
      %s76 = sphi 0, %s76
      %s78 = sphi 0, %s76
      %s79 = sphi 0, %s78
      %s93 = sphi 0, %s79
      %s97 = sphi 0, %s97
      %s99 = sphi 0, %s97
      %s100 = sphi 0, %s99
      %s114 = sphi 0, %s100
      %s118 = sphi 0, %s118
      %s120 = sphi 0, %s118
      %s121 = sphi 0, %s120
      %s135 = sphi 0, %s121
      %s139 = sphi 0, %s139
      %s141 = sphi 0, %s139
      %s142 = sphi 0, %s141
      %s156 = sphi 0, %s142
      %s160 = sphi 0, %s160
      %s162 = sphi 0, %s160
      %s163 = sphi 0, %s162
      %s177 = sphi 0, %s163
      %s181 = sphi 0, %s181
      %s183 = sphi 0, %s181
      %s184 = sphi 0, %s183
      %s198 = sphi 0, %s184
      %s202 = sphi 0, %s202
      %s204 = sphi 0, %s202
      %s205 = sphi 0, %s204
      %s219 = sphi 0, %s205
      %s223 = sphi 0, %s223
      %s225 = sphi 0, %s223
      %s226 = sphi 0, %s225
      %s240 = sphi 0, %s226
      %s244 = sphi 0, %s244
      %s246 = sphi 0, %s244
      %s247 = sphi 0, %s246
      %s261 = sphi 0, %s247
      %s267 = sphi 0, %s269
      %s270 = sphi 0, %s267
      %s271 = sphi 0, %s270
      %s287 = sphi 0, %s271
    $region4: #{tpu_custom_call.1} parent=1 // loop_header_branch
      %24 = sbr.rel (%p22) target = $region8
    $region5: #{tpu_custom_call.1} parent=1 // loop_body
      %s26 = ssub.s32 %s21, 1
      %s27 = ssub.s32 %s21, 2
      %s28 = sadd.s32 %s21, 1
      %s29 = ssub.s32 %s21, %s28
      %p30 = scmp.eq.s32.totalorder %s29, 0
      %s32 = sadd.s32 %s31, 1
      %s33 = scalar_select %p30, %s31, %s32
      %p36 = pneg %p30
      %p37 = scmp.eq.s32.totalorder %s21, 1
      %p38 = por %p36, %p37
      %p39 = scmp.ne.s32.totalorder %s31, %s34
      %p40 = scmp.eq.s32.totalorder %s21, 0
      %p41 = por %p39, %p40
      %p42 = scmp.ne.s32.totalorder %s31, %s34
      %p43 = scmp.eq.s32.totalorder %s26, 1
      %p44 = por %p42, %p43
      %p45 = scmp.ne.s32.totalorder %s34, %s35
      %p46 = scmp.eq.s32.totalorder %s26, 0
      %p47 = por %p45, %p46
      %p48 = scmp.ne.s32.totalorder %s34, %s35
      %p49 = scmp.eq.s32.totalorder %s27, 1
      %p50 = por %p48, %p49
      %p52 = scmp.ne.s32.totalorder %s35, %s51
      %p53 = scmp.eq.s32.totalorder %s27, 0
      %p54 = por %p52, %p53
      %s56 = sadd.s32 %s55, 1
      %p59 = scmp.eq.s32.totalorder %s21, 1
      %p60 = scmp.ne.s32.totalorder %s55, %s57
      %p61 = scmp.eq.s32.totalorder %s21, 0
      %p62 = por %p60, %p61
      %p63 = scmp.ne.s32.totalorder %s55, %s57
      %p64 = scmp.eq.s32.totalorder %s26, 1
      %p65 = por %p63, %p64
      %p66 = scmp.ne.s32.totalorder %s57, %s58
      %p67 = scmp.eq.s32.totalorder %s26, 0
      %p68 = por %p66, %p67
      %p69 = scmp.ne.s32.totalorder %s57, %s58
      %p70 = scmp.eq.s32.totalorder %s27, 1
      %p71 = por %p69, %p70
      %p73 = scmp.ne.s32.totalorder %s58, %s72
      %p74 = scmp.eq.s32.totalorder %s27, 0
      %p75 = por %p73, %p74
      %s77 = sadd.s32 %s76, 1
      %p80 = scmp.eq.s32.totalorder %s21, 1
      %p81 = scmp.ne.s32.totalorder %s76, %s78
      %p82 = scmp.eq.s32.totalorder %s21, 0
      %p83 = por %p81, %p82
      %p84 = scmp.ne.s32.totalorder %s76, %s78
      %p85 = scmp.eq.s32.totalorder %s26, 1
      %p86 = por %p84, %p85
      %p87 = scmp.ne.s32.totalorder %s78, %s79
      %p88 = scmp.eq.s32.totalorder %s26, 0
      %p89 = por %p87, %p88
      %p90 = scmp.ne.s32.totalorder %s78, %s79
      %p91 = scmp.eq.s32.totalorder %s27, 1
      %p92 = por %p90, %p91
      %p94 = scmp.ne.s32.totalorder %s79, %s93
      %p95 = scmp.eq.s32.totalorder %s27, 0
      %p96 = por %p94, %p95
      %s98 = sadd.s32 %s97, 1
      %p101 = scmp.eq.s32.totalorder %s21, 1
      %p102 = scmp.ne.s32.totalorder %s97, %s99
      %p103 = scmp.eq.s32.totalorder %s21, 0
      %p104 = por %p102, %p103
      %p105 = scmp.ne.s32.totalorder %s97, %s99
      %p106 = scmp.eq.s32.totalorder %s26, 1
      %p107 = por %p105, %p106
      %p108 = scmp.ne.s32.totalorder %s99, %s100
      %p109 = scmp.eq.s32.totalorder %s26, 0
      %p110 = por %p108, %p109
      %p111 = scmp.ne.s32.totalorder %s99, %s100
      %p112 = scmp.eq.s32.totalorder %s27, 1
      %p113 = por %p111, %p112
      %p115 = scmp.ne.s32.totalorder %s100, %s114
      %p116 = scmp.eq.s32.totalorder %s27, 0
      %p117 = por %p115, %p116
      %s119 = sadd.s32 %s118, 1
      %p122 = scmp.eq.s32.totalorder %s21, 1
      %p123 = scmp.ne.s32.totalorder %s118, %s120
      %p124 = scmp.eq.s32.totalorder %s21, 0
      %p125 = por %p123, %p124
      %p126 = scmp.ne.s32.totalorder %s118, %s120
      %p127 = scmp.eq.s32.totalorder %s26, 1
      %p128 = por %p126, %p127
      %p129 = scmp.ne.s32.totalorder %s120, %s121
      %p130 = scmp.eq.s32.totalorder %s26, 0
      %p131 = por %p129, %p130
      %p132 = scmp.ne.s32.totalorder %s120, %s121
      %p133 = scmp.eq.s32.totalorder %s27, 1
      %p134 = por %p132, %p133
      %p136 = scmp.ne.s32.totalorder %s121, %s135
      %p137 = scmp.eq.s32.totalorder %s27, 0
      %p138 = por %p136, %p137
      %s140 = sadd.s32 %s139, 1
      %p143 = scmp.eq.s32.totalorder %s21, 1
      %p144 = scmp.ne.s32.totalorder %s139, %s141
      %p145 = scmp.eq.s32.totalorder %s21, 0
      %p146 = por %p144, %p145
      %p147 = scmp.ne.s32.totalorder %s139, %s141
      %p148 = scmp.eq.s32.totalorder %s26, 1
      %p149 = por %p147, %p148
      %p150 = scmp.ne.s32.totalorder %s141, %s142
      %p151 = scmp.eq.s32.totalorder %s26, 0
      %p152 = por %p150, %p151
      %p153 = scmp.ne.s32.totalorder %s141, %s142
      %p154 = scmp.eq.s32.totalorder %s27, 1
      %p155 = por %p153, %p154
      %p157 = scmp.ne.s32.totalorder %s142, %s156
      %p158 = scmp.eq.s32.totalorder %s27, 0
      %p159 = por %p157, %p158
      %s161 = sadd.s32 %s160, 1
      %p164 = scmp.eq.s32.totalorder %s21, 1
      %p165 = scmp.ne.s32.totalorder %s160, %s162
      %p166 = scmp.eq.s32.totalorder %s21, 0
      %p167 = por %p165, %p166
      %p168 = scmp.ne.s32.totalorder %s160, %s162
      %p169 = scmp.eq.s32.totalorder %s26, 1
      %p170 = por %p168, %p169
      %p171 = scmp.ne.s32.totalorder %s162, %s163
      %p172 = scmp.eq.s32.totalorder %s26, 0
      %p173 = por %p171, %p172
      %p174 = scmp.ne.s32.totalorder %s162, %s163
      %p175 = scmp.eq.s32.totalorder %s27, 1
      %p176 = por %p174, %p175
      %p178 = scmp.ne.s32.totalorder %s163, %s177
      %p179 = scmp.eq.s32.totalorder %s27, 0
      %p180 = por %p178, %p179
      %s182 = sadd.s32 %s181, 1
      %p185 = scmp.eq.s32.totalorder %s21, 1
      %p186 = scmp.ne.s32.totalorder %s181, %s183
      %p187 = scmp.eq.s32.totalorder %s21, 0
      %p188 = por %p186, %p187
      %p189 = scmp.ne.s32.totalorder %s181, %s183
      %p190 = scmp.eq.s32.totalorder %s26, 1
      %p191 = por %p189, %p190
      %p192 = scmp.ne.s32.totalorder %s183, %s184
      %p193 = scmp.eq.s32.totalorder %s26, 0
      %p194 = por %p192, %p193
      %p195 = scmp.ne.s32.totalorder %s183, %s184
      %p196 = scmp.eq.s32.totalorder %s27, 1
      %p197 = por %p195, %p196
      %p199 = scmp.ne.s32.totalorder %s184, %s198
      %p200 = scmp.eq.s32.totalorder %s27, 0
      %p201 = por %p199, %p200
      %s203 = sadd.s32 %s202, 1
      %p206 = scmp.eq.s32.totalorder %s21, 1
      %p207 = scmp.ne.s32.totalorder %s202, %s204
      %p208 = scmp.eq.s32.totalorder %s21, 0
      %p209 = por %p207, %p208
      %p210 = scmp.ne.s32.totalorder %s202, %s204
      %p211 = scmp.eq.s32.totalorder %s26, 1
      %p212 = por %p210, %p211
      %p213 = scmp.ne.s32.totalorder %s204, %s205
      %p214 = scmp.eq.s32.totalorder %s26, 0
      %p215 = por %p213, %p214
      %p216 = scmp.ne.s32.totalorder %s204, %s205
      %p217 = scmp.eq.s32.totalorder %s27, 1
      %p218 = por %p216, %p217
      %p220 = scmp.ne.s32.totalorder %s205, %s219
      %p221 = scmp.eq.s32.totalorder %s27, 0
      %p222 = por %p220, %p221
      %s224 = sadd.s32 %s223, 1
      %p227 = scmp.eq.s32.totalorder %s21, 1
      %p228 = scmp.ne.s32.totalorder %s223, %s225
      %p229 = scmp.eq.s32.totalorder %s21, 0
      %p230 = por %p228, %p229
      %p231 = scmp.ne.s32.totalorder %s223, %s225
      %p232 = scmp.eq.s32.totalorder %s26, 1
      %p233 = por %p231, %p232
      %p234 = scmp.ne.s32.totalorder %s225, %s226
      %p235 = scmp.eq.s32.totalorder %s26, 0
      %p236 = por %p234, %p235
      %p237 = scmp.ne.s32.totalorder %s225, %s226
      %p238 = scmp.eq.s32.totalorder %s27, 1
      %p239 = por %p237, %p238
      %p241 = scmp.ne.s32.totalorder %s226, %s240
      %p242 = scmp.eq.s32.totalorder %s27, 0
      %p243 = por %p241, %p242
      %s245 = sadd.s32 %s244, 1
      %p248 = scmp.eq.s32.totalorder %s21, 1
      %p249 = scmp.ne.s32.totalorder %s244, %s246
      %p250 = scmp.eq.s32.totalorder %s21, 0
      %p251 = por %p249, %p250
      %p252 = scmp.ne.s32.totalorder %s244, %s246
      %p253 = scmp.eq.s32.totalorder %s26, 1
      %p254 = por %p252, %p253
      %p255 = scmp.ne.s32.totalorder %s246, %s247
      %p256 = scmp.eq.s32.totalorder %s26, 0
      %p257 = por %p255, %p256
      %p258 = scmp.ne.s32.totalorder %s246, %s247
      %p259 = scmp.eq.s32.totalorder %s27, 1
      %p260 = por %p258, %p259
      %p262 = scmp.ne.s32.totalorder %s247, %s261
      %p263 = scmp.eq.s32.totalorder %s27, 0
      %p264 = por %p262, %p263
      %s265 = ssub.s32 %s21, %s28
      %p266 = scmp.eq.s32.totalorder %s265, 0
      %s268 = sadd.s32 %s267, 1
      %s269 = scalar_select %p266, %s267, %s268
      %p272 = pneg %p266
      %p273 = scmp.eq.s32.totalorder %s21, 1
      %p274 = por %p272, %p273
      %p275 = scmp.ne.s32.totalorder %s267, %s270
      %p276 = scmp.eq.s32.totalorder %s21, 0
      %p277 = por %p275, %p276
      %p278 = scmp.ne.s32.totalorder %s267, %s270
      %p279 = scmp.eq.s32.totalorder %s26, 1
      %p280 = por %p278, %p279
      %p281 = scmp.ne.s32.totalorder %s270, %s271
      %p282 = scmp.eq.s32.totalorder %s26, 0
      %p283 = por %p281, %p282
      %p284 = scmp.ne.s32.totalorder %s270, %s271
      %p285 = scmp.eq.s32.totalorder %s27, 1
      %p286 = por %p284, %p285
      %p288 = scmp.ne.s32.totalorder %s271, %s287
      %p289 = scmp.eq.s32.totalorder %s27, 0
      %p290 = por %p288, %p289
      %p291 = scmp.le.s32.totalorder 1, %s21
      %p292 = scmp.lt.s32.totalorder %s21, 3
      %p293 = pnand %p291, %p292
      %p294 = pneg %p293
      // Predicated region
      $region9: #{tpu_custom_call.1} parent=5 // pred_check
        _
      $region10: #{tpu_custom_call.1} parent=5 // pred_check_branch
        %296 = sbr.rel (%p293) target = $region12
      $region11: #{tpu_custom_call.1} parent=5 // pred_region
        %s297 = ssub.s32 %s21, 1
        // Predicated region
        $region13: #{tpu_custom_call.1} parent=11 // pred_check
          %p298 = pneg %p68
        $region14: #{tpu_custom_call.1} parent=11 // pred_check_branch
          %300 = sbr.rel (%p298) target = $region16
        $region15: #{tpu_custom_call.1} parent=11 // pred_region
          _
        $region16: #{tpu_custom_call.1} parent=11 // pred_fallthru
          _
        // Predicated region
        $region17: #{tpu_custom_call.1} parent=11 // pred_check
          %p301 = pneg %p89
        $region18: #{tpu_custom_call.1} parent=11 // pred_check_branch
          %303 = sbr.rel (%p301) target = $region20
        $region19: #{tpu_custom_call.1} parent=11 // pred_region
          _
        $region20: #{tpu_custom_call.1} parent=11 // pred_fallthru
          _
        // Predicated region
        $region21: #{tpu_custom_call.1} parent=11 // pred_check
          %p304 = pneg %p110
        $region22: #{tpu_custom_call.1} parent=11 // pred_check_branch
          %306 = sbr.rel (%p304) target = $region24
        $region23: #{tpu_custom_call.1} parent=11 // pred_region
          _
        $region24: #{tpu_custom_call.1} parent=11 // pred_fallthru
          _
        // Predicated region
        $region25: #{tpu_custom_call.1} parent=11 // pred_check
          %p307 = pneg %p131
        $region26: #{tpu_custom_call.1} parent=11 // pred_check_branch
          %309 = sbr.rel (%p307) target = $region28
        $region27: #{tpu_custom_call.1} parent=11 // pred_region
          _
        $region28: #{tpu_custom_call.1} parent=11 // pred_fallthru
          _
        // Predicated region
        $region29: #{tpu_custom_call.1} parent=11 // pred_check
          %p310 = pneg %p152
        $region30: #{tpu_custom_call.1} parent=11 // pred_check_branch
          %312 = sbr.rel (%p310) target = $region32
        $region31: #{tpu_custom_call.1} parent=11 // pred_region
          _
        $region32: #{tpu_custom_call.1} parent=11 // pred_fallthru
          _
        // Predicated region
        $region33: #{tpu_custom_call.1} parent=11 // pred_check
          %p313 = pneg %p173
        $region34: #{tpu_custom_call.1} parent=11 // pred_check_branch
          %315 = sbr.rel (%p313) target = $region36
        $region35: #{tpu_custom_call.1} parent=11 // pred_region
          _
        $region36: #{tpu_custom_call.1} parent=11 // pred_fallthru
          _
        // Predicated region
        $region37: #{tpu_custom_call.1} parent=11 // pred_check
          %p316 = pneg %p194
        $region38: #{tpu_custom_call.1} parent=11 // pred_check_branch
          %318 = sbr.rel (%p316) target = $region40
        $region39: #{tpu_custom_call.1} parent=11 // pred_region
          _
        $region40: #{tpu_custom_call.1} parent=11 // pred_fallthru
          _
        // Predicated region
        $region41: #{tpu_custom_call.1} parent=11 // pred_check
          %p319 = pneg %p215
        $region42: #{tpu_custom_call.1} parent=11 // pred_check_branch
          %321 = sbr.rel (%p319) target = $region44
        $region43: #{tpu_custom_call.1} parent=11 // pred_region
          _
        $region44: #{tpu_custom_call.1} parent=11 // pred_fallthru
          _
        // Predicated region
        $region45: #{tpu_custom_call.1} parent=11 // pred_check
          %p322 = pneg %p236
        $region46: #{tpu_custom_call.1} parent=11 // pred_check_branch
          %324 = sbr.rel (%p322) target = $region48
        $region47: #{tpu_custom_call.1} parent=11 // pred_region
          %326 = vsyncadd [#allocation3], 0
          %s327 = sshll.u32 %s9, 4
          %s328 = int_to_ptr.hbm [resolvable:$true] %s327
          %s329 = sshll.u32 [#allocation2], 4
          %s330 = int_to_ptr.vmem [resolvable:$true] %s329
          %335 = dma.hbm_to_vmem [thread:$0]  %s328, 5120, %s330, [#allocation3], 128, 128, 8
        $region48: #{tpu_custom_call.1} parent=11 // pred_fallthru
          _
        // Predicated region
        $region49: #{tpu_custom_call.1} parent=11 // pred_check
          %p336 = pneg %p257
        $region50: #{tpu_custom_call.1} parent=11 // pred_check_branch
          %338 = sbr.rel (%p336) target = $region52
        $region51: #{tpu_custom_call.1} parent=11 // pred_region
          _
        $region52: #{tpu_custom_call.1} parent=11 // pred_fallthru
          _
      $region12: #{tpu_custom_call.1} parent=5 // pred_fallthru
        _
      %p339 = scmp.lt.s32.totalorder %s21, 2
      // Predicated region
      $region53: #{tpu_custom_call.1} parent=5 // pred_check
        %p340 = pneg %p339
      $region54: #{tpu_custom_call.1} parent=5 // pred_check_branch
        %342 = sbr.rel (%p340) target = $region56
      $region55: #{tpu_custom_call.1} parent=5 // pred_region
        // Predicated region
        $region57: #{tpu_custom_call.1} parent=55 // pred_check
          %p343 = pneg %p41
        $region58: #{tpu_custom_call.1} parent=55 // pred_check_branch
          %345 = sbr.rel (%p343) target = $region60
        $region59: #{tpu_custom_call.1} parent=55 // pred_region
          %p346 = scmp.lt.s32.totalorder %s21, 1
          %s347 = scalar_select %p346, %s21, 1
          %s348 = smul.addr %s347, 8
          %s349 = smul.addr %s348, 8
          %s350 = scalar_lea.vmem %s0, %s349
        $region60: #{tpu_custom_call.1} parent=55 // pred_fallthru
          _
      $region56: #{tpu_custom_call.1} parent=5 // pred_fallthru
        _
      %p351 = scmp.le.s32.totalorder 1, %s21
      %p352 = scmp.lt.s32.totalorder %s21, 3
      %p353 = pnand %p351, %p352
      %p354 = pneg %p353
      // Predicated region
      $region61: #{tpu_custom_call.1} parent=5 // pred_check
        _
      $region62: #{tpu_custom_call.1} parent=5 // pred_check_branch
        %356 = sbr.rel (%p353) target = $region64
      $region63: #{tpu_custom_call.1} parent=5 // pred_region
        %s357 = ssub.s32 %s21, 1
        // Predicated region
        $region65: #{tpu_custom_call.1} parent=63 // pred_check
          %p358 = pneg %p236
        $region66: #{tpu_custom_call.1} parent=63 // pred_check_branch
          %360 = sbr.rel (%p358) target = $region68
        $region67: #{tpu_custom_call.1} parent=63 // pred_region
          %362 = dma.done [#allocation3], 5120
        $region68: #{tpu_custom_call.1} parent=63 // pred_fallthru
          _
        %p363 = scmp.lt.s32.totalorder %s26, 1
        %s364 = scalar_select %p363, %s26, 1
        %s365 = smul.addr %s364, 8
        %s366 = smul.addr %s365, 8
        %s367 = scalar_lea.vmem %s0, %s366
        %p368 = pneg %p47
        %p369 = pneg %p44
        %p370 = pneg %p68
        %p371 = pneg %p65
        %p372 = pneg %p89
        %p373 = pneg %p86
        %p374 = pneg %p110
        %p375 = pneg %p107
        %p376 = pneg %p131
        %p377 = pneg %p128
        %p378 = pneg %p152
        %p379 = pneg %p149
        %p380 = pneg %p173
        %p381 = pneg %p170
        %p382 = pneg %p194
        %p383 = pneg %p191
        %p384 = pneg %p215
        %p385 = pneg %p212
        %p386 = pneg %p236
        %p387 = pneg %p233
        %p388 = pneg %p257
        %p389 = pneg %p254
        %p390 = pneg %p283
        %p391 = pneg %p280
        %s392 = sand.u32 %s270, 1
        %s393 = scalar_lea.sflag [#allocation4], %s392
        %s394 = sand.u32 %s270, 1
        %s395 = scalar_lea.vmem [#allocation5], %s394
        %p396 = scmp.lt.s32.totalorder %s26, 1
        %s397 = scalar_select %p396, %s26, 1
        %s398 = smul.addr %s397, 8
        %s399 = smul.addr %s398, 8
        %s400 = scalar_lea.vmem %s0, %s399
        %v401 = vld [vmem:[%s400] sm:$0xff]
        %v402 = vld [vmem:[%s400 + $0x8] sm:$0xf]
        %v403 = vld [vmem:[%s400 + $0x10] sm:$0xff]
        %v404 = vld [vmem:[%s400 + $0x18] sm:$0xf]
        %v405 = vld [vmem:[%s400 + $0x20] sm:$0xff]
        %v406 = vld [vmem:[%s400 + $0x28] sm:$0xf]
        %v407 = vld [vmem:[%s400 + $0x30] sm:$0xff]
        %v408 = vld [vmem:[%s400 + $0x38] sm:$0xf]
        %v409 = vld [vmem:[%s1] sm:$0xf]
        %v410 = vld [vmem:[%s2] sm:$0xf]
        %vm411 = vcmask 64512
        %v412 = vsel %vm411, %v401, 0.0
        %413 = vadd.xlane.f32.xlu0 %v412
        %v414 = vpop.xlane.xlu0 %413
        %vm415 = vcmask 60416
        %v416 = vsel %vm415, %v402, 0.0
        %417 = vadd.xlane.f32.xlu0 %v416
        %v418 = vpop.xlane.xlu0 %417
        %v419 = vsel %vm411, %v403, 0.0
        %420 = vadd.xlane.f32.xlu0 %v419
        %v421 = vpop.xlane.xlu0 %420
        %v422 = vsel %vm415, %v404, 0.0
        %423 = vadd.xlane.f32.xlu0 %v422
        %v424 = vpop.xlane.xlu0 %423
        %v425 = vsel %vm411, %v405, 0.0
        %426 = vadd.xlane.f32.xlu0 %v425
        %v427 = vpop.xlane.xlu0 %426
        %v428 = vsel %vm415, %v406, 0.0
        %429 = vadd.xlane.f32.xlu0 %v428
        %v430 = vpop.xlane.xlu0 %429
        %v431 = vsel %vm411, %v407, 0.0
        %432 = vadd.xlane.f32.xlu0 %v431
        %v433 = vpop.xlane.xlu0 %432
        %v434 = vsel %vm415, %v408, 0.0
        %435 = vadd.xlane.f32.xlu0 %v434
        %v436 = vpop.xlane.xlu0 %435
        %v437 = vrcp.pop 8.0
        %v438 = vmul.f32 8.0, %v437
        %v439 = vsub.f32 1.0, %v438
        %v440 = vmul.f32 %v437, %v439
        %v441 = vadd.f32 %v437, %v440
        %vm442 = vweird.f32 %v437
        %v443 = vsel %vm442, %v437, %v441
        %v444 = vmul.f32 %v414, %v443
        %v445 = vmul.f32 %v418, %v443
        %v446 = vmul.f32 %v421, %v443
        %v447 = vmul.f32 %v424, %v443
        %v448 = vmul.f32 %v427, %v443
        %v449 = vmul.f32 %v430, %v443
        %v450 = vmul.f32 %v433, %v443
        %v451 = vmul.f32 %v436, %v443
        %v452 = vadd.f32 %v444, %v446
        %v453 = vadd.f32 %v452, %v448
        %v454 = vadd.f32 %v453, %v450
        %vm455 = vcmask 1043456
        %v456 = vsel %vm455, %v445, 0.0
        %v457 = vsel %vm455, %v447, 0.0
        %v458 = vadd.f32 %v456, %v457
        %v459 = vsel %vm455, %v449, 0.0
        %v460 = vadd.f32 %v458, %v459
        %v461 = vsel %vm455, %v451, 0.0
        %v462 = vadd.f32 %v460, %v461
        %v463 = vrcp.pop 4.0
        %v464 = vmul.f32 4.0, %v463
        %v465 = vsub.f32 1.0, %v464
        %v466 = vmul.f32 %v463, %v465
        %v467 = vadd.f32 %v463, %v466
        %vm468 = vweird.f32 %v463
        %v469 = vsel %vm468, %v463, %v467
        %v470 = vmul.f32 %v454, %v469
        %v471 = vmul.f32 %v462, %v469
        %v472 = vsub.f32 %v401, %v470
        %v473 = vsub.f32 %v402, %v471
        %v474 = vsub.f32 %v403, %v470
        %v475 = vsub.f32 %v404, %v471
        %v476 = vsub.f32 %v405, %v470
        %v477 = vsub.f32 %v406, %v471
        %v478 = vsub.f32 %v407, %v470
        %v479 = vsub.f32 %v408, %v471
        %v480 = vmul.f32 %v472, %v472
        %v481 = vmul.f32 %v473, %v473
        %v482 = vmul.f32 %v474, %v474
        %v483 = vmul.f32 %v475, %v475
        %v484 = vmul.f32 %v476, %v476
        %v485 = vmul.f32 %v477, %v477
        %v486 = vmul.f32 %v478, %v478
        %v487 = vmul.f32 %v479, %v479
        %v488 = vsel %vm411, %v480, 0.0
        %489 = vadd.xlane.f32.xlu0 %v488
        %v490 = vpop.xlane.xlu0 %489
        %v491 = vsel %vm415, %v481, 0.0
        %492 = vadd.xlane.f32.xlu0 %v491
        %v493 = vpop.xlane.xlu0 %492
        %v494 = vsel %vm411, %v482, 0.0
        %495 = vadd.xlane.f32.xlu0 %v494
        %v496 = vpop.xlane.xlu0 %495
        %v497 = vsel %vm415, %v483, 0.0
        %498 = vadd.xlane.f32.xlu0 %v497
        %v499 = vpop.xlane.xlu0 %498
        %v500 = vsel %vm411, %v484, 0.0
        %501 = vadd.xlane.f32.xlu0 %v500
        %v502 = vpop.xlane.xlu0 %501
        %v503 = vsel %vm415, %v485, 0.0
        %504 = vadd.xlane.f32.xlu0 %v503
        %v505 = vpop.xlane.xlu0 %504
        %v506 = vsel %vm411, %v486, 0.0
        %507 = vadd.xlane.f32.xlu0 %v506
        %v508 = vpop.xlane.xlu0 %507
        %v509 = vsel %vm415, %v487, 0.0
        %510 = vadd.xlane.f32.xlu0 %v509
        %v511 = vpop.xlane.xlu0 %510
        %v512 = vmul.f32 %v490, %v443
        %v513 = vmul.f32 %v493, %v443
        %v514 = vmul.f32 %v496, %v443
        %v515 = vmul.f32 %v499, %v443
        %v516 = vmul.f32 %v502, %v443
        %v517 = vmul.f32 %v505, %v443
        %v518 = vmul.f32 %v508, %v443
        %v519 = vmul.f32 %v511, %v443
        %v520 = vadd.f32 %v512, %v514
        %v521 = vadd.f32 %v520, %v516
        %v522 = vadd.f32 %v521, %v518
        %v523 = vsel %vm455, %v513, 0.0
        %v524 = vsel %vm455, %v515, 0.0
        %v525 = vadd.f32 %v523, %v524
        %v526 = vsel %vm455, %v517, 0.0
        %v527 = vadd.f32 %v525, %v526
        %v528 = vsel %vm455, %v519, 0.0
        %v529 = vadd.f32 %v527, %v528
        %v530 = vmul.f32 %v522, %v469
        %v531 = vmul.f32 %v529, %v469
        %v532 = vadd.f32 %v530, 1e-05
        %v533 = vadd.f32 %v531, 1e-05
        %v534 = vrsqrt.pop %v532
        %v535 = vmul.f32 %v534, %v532
        %v536 = vmul.f32 %v535, %v534
        %v537 = vmul.f32 0.5, %v536
        %v538 = vsub.f32 1.5, %v537
        %v539 = vmul.f32 %v534, %v538
        %vm540 = vweird.f32 %v532
        %vm541 = vweird.f32 %v534
        %vm542 = vmor %vm540, %vm541
        %v543 = vsel %vm542, %v534, %v539
        %v544 = vrsqrt.pop %v533
        %v545 = vmul.f32 %v544, %v533
        %v546 = vmul.f32 %v545, %v544
        %v547 = vmul.f32 0.5, %v546
        %v548 = vsub.f32 1.5, %v547
        %v549 = vmul.f32 %v544, %v548
        %vm550 = vweird.f32 %v533
        %vm551 = vweird.f32 %v544
        %vm552 = vmor %vm550, %vm551
        %v553 = vsel %vm552, %v544, %v549
        %v554 = vmul.f32 %v472, %v543
        %v555 = vmul.f32 %v473, %v553
        %v556 = vmul.f32 %v474, %v543
        %v557 = vmul.f32 %v475, %v553
        %v558 = vmul.f32 %v476, %v543
        %v559 = vmul.f32 %v477, %v553
        %v560 = vmul.f32 %v478, %v543
        %v561 = vmul.f32 %v479, %v553
        %v563 = vrot.slane %v409, 1
        %v564 = vrot.slane %v409, 2
        %v565 = vrot.slane %v409, 3
        %v566 = vperm.slane %v409, 0
        %v567 = vperm.slane %v563, 0
        %v568 = vperm.slane %v564, 0
        %v569 = vperm.slane %v565, 0
        %v574 = vmul.f32 %v554, %v566
        %v575 = vmul.f32 %v555, %v566
        %v576 = vmul.f32 %v556, %v567
        %v577 = vmul.f32 %v557, %v567
        %v578 = vmul.f32 %v558, %v568
        %v579 = vmul.f32 %v559, %v568
        %v580 = vmul.f32 %v560, %v569
        %v581 = vmul.f32 %v561, %v569
        %v583 = vrot.slane %v410, 1
        %v584 = vrot.slane %v410, 2
        %v585 = vrot.slane %v410, 3
        %v586 = vperm.slane %v410, 0
        %v587 = vperm.slane %v583, 0
        %v588 = vperm.slane %v584, 0
        %v589 = vperm.slane %v585, 0
        %v594 = vadd.f32 %v574, %v586
        %v595 = vadd.f32 %v575, %v586
        %v596 = vadd.f32 %v576, %v587
        %v597 = vadd.f32 %v577, %v587
        %v598 = vadd.f32 %v578, %v588
        %v599 = vadd.f32 %v579, %v588
        %v600 = vadd.f32 %v580, %v589
        %v601 = vadd.f32 %v581, %v589
        %s602 = scalar_lea.vmem %s1, 4
        %v603 = vld [vmem:[%s602] sm:$0xf]
        %s604 = scalar_lea.vmem %s2, 4
        %v605 = vld [vmem:[%s604] sm:$0xf]
        %v606 = vsel %vm411, %v594, 0.0
        %607 = vadd.xlane.f32.xlu0 %v606
        %v608 = vpop.xlane.xlu0 %607
        %v609 = vsel %vm415, %v595, 0.0
        %610 = vadd.xlane.f32.xlu0 %v609
        %v611 = vpop.xlane.xlu0 %610
        %v612 = vsel %vm411, %v596, 0.0
        %613 = vadd.xlane.f32.xlu0 %v612
        %v614 = vpop.xlane.xlu0 %613
        %v615 = vsel %vm415, %v597, 0.0
        %616 = vadd.xlane.f32.xlu0 %v615
        %v617 = vpop.xlane.xlu0 %616
        %v618 = vsel %vm411, %v598, 0.0
        %619 = vadd.xlane.f32.xlu0 %v618
        %v620 = vpop.xlane.xlu0 %619
        %v621 = vsel %vm415, %v599, 0.0
        %622 = vadd.xlane.f32.xlu0 %v621
        %v623 = vpop.xlane.xlu0 %622
        %v624 = vsel %vm411, %v600, 0.0
        %625 = vadd.xlane.f32.xlu0 %v624
        %v626 = vpop.xlane.xlu0 %625
        %v627 = vsel %vm415, %v601, 0.0
        %628 = vadd.xlane.f32.xlu0 %v627
        %v629 = vpop.xlane.xlu0 %628
        %v630 = vmul.f32 %v608, %v443
        %v631 = vmul.f32 %v611, %v443
        %v632 = vmul.f32 %v614, %v443
        %v633 = vmul.f32 %v617, %v443
        %v634 = vmul.f32 %v620, %v443
        %v635 = vmul.f32 %v623, %v443
        %v636 = vmul.f32 %v626, %v443
        %v637 = vmul.f32 %v629, %v443
        %v638 = vadd.f32 %v630, %v632
        %v639 = vadd.f32 %v638, %v634
        %v640 = vadd.f32 %v639, %v636
        %v641 = vsel %vm455, %v631, 0.0
        %v642 = vsel %vm455, %v633, 0.0
        %v643 = vadd.f32 %v641, %v642
        %v644 = vsel %vm455, %v635, 0.0
        %v645 = vadd.f32 %v643, %v644
        %v646 = vsel %vm455, %v637, 0.0
        %v647 = vadd.f32 %v645, %v646
        %v648 = vmul.f32 %v640, %v469
        %v649 = vmul.f32 %v647, %v469
        %v650 = vsub.f32 %v594, %v648
        %v651 = vsub.f32 %v595, %v649
        %v652 = vsub.f32 %v596, %v648
        %v653 = vsub.f32 %v597, %v649
        %v654 = vsub.f32 %v598, %v648
        %v655 = vsub.f32 %v599, %v649
        %v656 = vsub.f32 %v600, %v648
        %v657 = vsub.f32 %v601, %v649
        %v658 = vmul.f32 %v650, %v650
        %v659 = vmul.f32 %v651, %v651
        %v660 = vmul.f32 %v652, %v652
        %v661 = vmul.f32 %v653, %v653
        %v662 = vmul.f32 %v654, %v654
        %v663 = vmul.f32 %v655, %v655
        %v664 = vmul.f32 %v656, %v656
        %v665 = vmul.f32 %v657, %v657
        %v666 = vsel %vm411, %v658, 0.0
        %667 = vadd.xlane.f32.xlu0 %v666
        %v668 = vpop.xlane.xlu0 %667
        %v669 = vsel %vm415, %v659, 0.0
        %670 = vadd.xlane.f32.xlu0 %v669
        %v671 = vpop.xlane.xlu0 %670
        %v672 = vsel %vm411, %v660, 0.0
        %673 = vadd.xlane.f32.xlu0 %v672
        %v674 = vpop.xlane.xlu0 %673
        %v675 = vsel %vm415, %v661, 0.0
        %676 = vadd.xlane.f32.xlu0 %v675
        %v677 = vpop.xlane.xlu0 %676
        %v678 = vsel %vm411, %v662, 0.0
        %679 = vadd.xlane.f32.xlu0 %v678
        %v680 = vpop.xlane.xlu0 %679
        %v681 = vsel %vm415, %v663, 0.0
        %682 = vadd.xlane.f32.xlu0 %v681
        %v683 = vpop.xlane.xlu0 %682
        %v684 = vsel %vm411, %v664, 0.0
        %685 = vadd.xlane.f32.xlu0 %v684
        %v686 = vpop.xlane.xlu0 %685
        %v687 = vsel %vm415, %v665, 0.0
        %688 = vadd.xlane.f32.xlu0 %v687
        %v689 = vpop.xlane.xlu0 %688
        %v690 = vmul.f32 %v668, %v443
        %v691 = vmul.f32 %v671, %v443
        %v692 = vmul.f32 %v674, %v443
        %v693 = vmul.f32 %v677, %v443
        %v694 = vmul.f32 %v680, %v443
        %v695 = vmul.f32 %v683, %v443
        %v696 = vmul.f32 %v686, %v443
        %v697 = vmul.f32 %v689, %v443
        %v698 = vadd.f32 %v690, %v692
        %v699 = vadd.f32 %v698, %v694
        %v700 = vadd.f32 %v699, %v696
        %v701 = vsel %vm455, %v691, 0.0
        %v702 = vsel %vm455, %v693, 0.0
        %v703 = vadd.f32 %v701, %v702
        %v704 = vsel %vm455, %v695, 0.0
        %v705 = vadd.f32 %v703, %v704
        %v706 = vsel %vm455, %v697, 0.0
        %v707 = vadd.f32 %v705, %v706
        %v708 = vmul.f32 %v700, %v469
        %v709 = vmul.f32 %v707, %v469
        %v710 = vadd.f32 %v708, 1e-05
        %v711 = vadd.f32 %v709, 1e-05
        %v712 = vrsqrt.pop %v710
        %v713 = vmul.f32 %v712, %v710
        %v714 = vmul.f32 %v713, %v712
        %v715 = vmul.f32 0.5, %v714
        %v716 = vsub.f32 1.5, %v715
        %v717 = vmul.f32 %v712, %v716
        %vm718 = vweird.f32 %v710
        %vm719 = vweird.f32 %v712
        %vm720 = vmor %vm718, %vm719
        %v721 = vsel %vm720, %v712, %v717
        %v722 = vrsqrt.pop %v711
        %v723 = vmul.f32 %v722, %v711
        %v724 = vmul.f32 %v723, %v722
        %v725 = vmul.f32 0.5, %v724
        %v726 = vsub.f32 1.5, %v725
        %v727 = vmul.f32 %v722, %v726
        %vm728 = vweird.f32 %v711
        %vm729 = vweird.f32 %v722
        %vm730 = vmor %vm728, %vm729
        %v731 = vsel %vm730, %v722, %v727
        %v732 = vmul.f32 %v650, %v721
        %v733 = vmul.f32 %v651, %v731
        %v734 = vmul.f32 %v652, %v721
        %v735 = vmul.f32 %v653, %v731
        %v736 = vmul.f32 %v654, %v721
        %v737 = vmul.f32 %v655, %v731
        %v738 = vmul.f32 %v656, %v721
        %v739 = vmul.f32 %v657, %v731
        %v741 = vrot.slane %v603, 1
        %v742 = vrot.slane %v603, 2
        %v743 = vrot.slane %v603, 3
        %v744 = vperm.slane %v603, 0
        %v745 = vperm.slane %v741, 0
        %v746 = vperm.slane %v742, 0
        %v747 = vperm.slane %v743, 0
        %v752 = vmul.f32 %v732, %v744
        %v753 = vmul.f32 %v733, %v744
        %v754 = vmul.f32 %v734, %v745
        %v755 = vmul.f32 %v735, %v745
        %v756 = vmul.f32 %v736, %v746
        %v757 = vmul.f32 %v737, %v746
        %v758 = vmul.f32 %v738, %v747
        %v759 = vmul.f32 %v739, %v747
        %v761 = vrot.slane %v605, 1
        %v762 = vrot.slane %v605, 2
        %v763 = vrot.slane %v605, 3
        %v764 = vperm.slane %v605, 0
        %v765 = vperm.slane %v761, 0
        %v766 = vperm.slane %v762, 0
        %v767 = vperm.slane %v763, 0
        %v772 = vadd.f32 %v752, %v764
        %v773 = vadd.f32 %v753, %v764
        %v774 = vadd.f32 %v754, %v765
        %v775 = vadd.f32 %v755, %v765
        %v776 = vadd.f32 %v756, %v766
        %v777 = vadd.f32 %v757, %v766
        %v778 = vadd.f32 %v758, %v767
        %v779 = vadd.f32 %v759, %v767
        %v788 = vrot.slane %v772, 2
        %v789 = vrot.slane %v772, 4
        %v790 = vrot.slane %v772, 6
        %v791 = vrot.slane %v774, 2
        %v792 = vrot.slane %v774, 4
        %v793 = vrot.slane %v774, 6
        %v794 = vrot.slane %v776, 2
        %v795 = vrot.slane %v776, 4
        %v796 = vrot.slane %v776, 6
        %v797 = vrot.slane %v778, 2
        %v798 = vrot.slane %v778, 4
        %v799 = vrot.slane %v778, 6
        %v800 = vld [vmem:[%s3] sm:$0xff]
        %801 = vst [vmem:[#allocation1] ss:$4 sm:$0xff] %v772
        %s802 = scalar_lea.vmem [#allocation1], 1
        %803 = vst [vmem:[%s802] ss:$4 sm:$0xff] %v788
        %s804 = scalar_lea.vmem [#allocation1], 2
        %805 = vst [vmem:[%s804] ss:$4 sm:$0xff] %v789
        %s806 = scalar_lea.vmem [#allocation1], 3
        %807 = vst [vmem:[%s806] ss:$4 sm:$0xff] %v790
        %s808 = scalar_lea.vmem [#allocation1], 32
        %809 = vst [vmem:[%s808] ss:$4 sm:$0xff] %v773
        %s810 = scalar_lea.vmem [#allocation1], 33
        %811 = vst [vmem:[%s810] ss:$4 sm:$0xff] %v774
        %s812 = scalar_lea.vmem [#allocation1], 34
        %813 = vst [vmem:[%s812] ss:$4 sm:$0xff] %v791
        %s814 = scalar_lea.vmem [#allocation1], 35
        %815 = vst [vmem:[%s814] ss:$4 sm:$0xff] %v792
        %v816 = vld.sshfl [vmem:[#allocation1] sm:$0xff pattern:$0x73625140]
        %v817 = vld.sshfl [vmem:[#allocation1 + $0x20] sm:$0xff pattern:$0x73625140]
        %818 = vst [vmem:[#allocation1] ss:$4 sm:$0xff] %v793
        %819 = vst [vmem:[%s802] ss:$4 sm:$0xff] %v775
        %820 = vst [vmem:[%s804] ss:$4 sm:$0xff] %v776
        %821 = vst [vmem:[%s806] ss:$4 sm:$0xff] %v794
        %822 = vst [vmem:[%s808] ss:$4 sm:$0xff] %v795
        %823 = vst [vmem:[%s810] ss:$4 sm:$0xff] %v796
        %824 = vst [vmem:[%s812] ss:$4 sm:$0xff] %v777
        %825 = vst [vmem:[%s814] ss:$4 sm:$0xff] %v778
        %v826 = vld.sshfl [vmem:[#allocation1] sm:$0xff pattern:$0x73625140]
        %v827 = vld.sshfl [vmem:[#allocation1 + $0x20] sm:$0xff pattern:$0x73625140]
        %828 = vst [vmem:[#allocation1] ss:$4 sm:$0xff] %v797
        %829 = vst [vmem:[%s802] ss:$4 sm:$0xff] %v798
        %830 = vst [vmem:[%s804] ss:$4 sm:$0xff] %v799
        %831 = vst [vmem:[%s806] ss:$4 sm:$0xff] %v779
        %v832 = vld.sshfl [vmem:[#allocation1] sm:$0xff pattern:$0x73625140]
        %v833 = vsel %vm411, %v816, 0
        %v835 = vsel %vm411, %v817, 0
        %v837 = vsel %vm411, %v826, 0
        %v839 = vsel %vm411, %v827, 0
        %v841 = vsel %vm411, %v832, 0
        %843 = vmatpush.msra.mxu0 0.0
        %844 = vmatpush.msra.mxu0 0.0
        %845 = vmatpush.msra.mxu0 0.0
        %846 = vmatpush.msra.mxu0 0.0
        %847 = vmatpush.msra.mxu0 0.0
        %848 = vmatpush.msra.mxu0 0.0
        %849 = vmatpush.msra.mxu0 0.0
        %850 = vmatpush.msra.mxu0 0.0
        %851 = vmatpush.msra.mxu0 0.0
        %852 = vmatpush.msra.mxu0 0.0
        %853 = vmatpush.msra.mxu0 0.0
        %854 = vmatpush.msra.mxu0 0.0
        %855 = vmatpush.msra.mxu0 0.0
        %856 = vmatpush.msra.mxu0 0.0
        %857 = vmatpush.msra.mxu0 0.0
        %858 = vmatpush.msra.mxu0 %v800
        %859 = vmatmul.f32.gmra.mxu0 %v833
        %v860 = vpop.f32.mrf.mxu0
        %v861 = vadd.f32 0.0, %v860
        %862 = vmatmul.f32.gmra.mxu0 %v835
        %v863 = vpop.f32.mrf.mxu0
        %v864 = vadd.f32 0.0, %v863
        %865 = vmatmul.f32.gmra.mxu0 %v837
        %v866 = vpop.f32.mrf.mxu0
        %v867 = vadd.f32 0.0, %v866
        %868 = vmatmul.f32.gmra.mxu0 %v839
        %v869 = vpop.f32.mrf.mxu0
        %v870 = vadd.f32 0.0, %v869
        %871 = vmatmul.f32.gmra.mxu0 %v841
        %v872 = vpop.f32.mrf.mxu0
        %v873 = vadd.f32 0.0, %v872
        %874 = vdwg.mxu0
        %v880 = vrot.slane %v861, 2
        %v881 = vrot.slane %v861, 4
        %v882 = vrot.slane %v861, 6
        %v883 = vrot.slane %v864, 2
        %v884 = vrot.slane %v864, 4
        %v885 = vrot.slane %v864, 6
        %v886 = vrot.slane %v867, 2
        %v887 = vrot.slane %v867, 4
        %v888 = vrot.slane %v867, 6
        %v889 = vrot.slane %v870, 2
        %v890 = vrot.slane %v870, 4
        %v891 = vrot.slane %v870, 6
        %v892 = vrot.slane %v873, 2
        %v893 = vrot.slane %v873, 4
        %v894 = vrot.slane %v873, 6
        %v910 = vadd.f32 %v861, 0.0
        %v911 = vadd.f32 %v880, 0.0
        %v912 = vadd.f32 %v881, 0.0
        %v913 = vadd.f32 %v882, 0.0
        %v914 = vadd.f32 %v864, 0.0
        %v915 = vadd.f32 %v883, 0.0
        %v916 = vadd.f32 %v884, 0.0
        %v917 = vadd.f32 %v885, 0.0
        %v918 = vadd.f32 %v867, 0.0
        %v919 = vadd.f32 %v886, 0.0
        %v920 = vadd.f32 %v887, 0.0
        %v921 = vadd.f32 %v888, 0.0
        %v922 = vadd.f32 %v870, 0.0
        %v923 = vadd.f32 %v889, 0.0
        %v924 = vadd.f32 %v890, 0.0
        %v925 = vadd.f32 %v891, 0.0
        %v926 = vadd.f32 %v873, 0.0
        %v927 = vadd.f32 %v892, 0.0
        %v928 = vadd.f32 %v893, 0.0
        %v929 = vadd.f32 %v894, 0.0
        %v930 = vrot.slane %v773, 2
        %v931 = vrot.slane %v775, 2
        %v932 = vrot.slane %v777, 2
        %v933 = vrot.slane %v779, 2
        %vm934 = vcmask 1040384
        %vm935 = vcmask 1042434
        %vm936 = vmor %vm934, %vm935
        %vm937 = vcmask 1044484
        %vm938 = vmor %vm936, %vm937
        %vm939 = vcmask 1046534
        %vm940 = vmor %vm938, %vm939
        %v941 = vrot.slane %v772, 7
        %v942 = vrot.slane %v941, 2
        %v943 = vrot.slane %v788, 7
        %v944 = vsel %vm940, %v942, %v943
        %v945 = vrot.slane %v943, 2
        %v946 = vrot.slane %v789, 7
        %v947 = vsel %vm940, %v945, %v946
        %v948 = vrot.slane %v946, 2
        %v949 = vrot.slane %v790, 7
        %v950 = vsel %vm940, %v948, %v949
        %v951 = vrot.slane %v949, 2
        %v952 = vrot.slane %v773, 7
        %v953 = vsel %vm940, %v951, %v952
        %v954 = vrot.slane %v952, 2
        %v955 = vrot.slane %v930, 7
        %v956 = vsel %vm940, %v954, %v955
        %v957 = vrot.slane %v774, 7
        %v958 = vrot.slane %v957, 2
        %v959 = vrot.slane %v791, 7
        %v960 = vsel %vm940, %v958, %v959
        %v961 = vrot.slane %v959, 2
        %v962 = vrot.slane %v792, 7
        %v963 = vsel %vm940, %v961, %v962
        %v964 = vrot.slane %v962, 2
        %v965 = vrot.slane %v793, 7
        %v966 = vsel %vm940, %v964, %v965
        %v967 = vrot.slane %v965, 2
        %v968 = vrot.slane %v775, 7
        %v969 = vsel %vm940, %v967, %v968
        %v970 = vrot.slane %v968, 2
        %v971 = vrot.slane %v931, 7
        %v972 = vsel %vm940, %v970, %v971
        %v973 = vrot.slane %v776, 7
        %v974 = vrot.slane %v973, 2
        %v975 = vrot.slane %v794, 7
        %v976 = vsel %vm940, %v974, %v975
        %v977 = vrot.slane %v975, 2
        %v978 = vrot.slane %v795, 7
        %v979 = vsel %vm940, %v977, %v978
        %v980 = vrot.slane %v978, 2
        %v981 = vrot.slane %v796, 7
        %v982 = vsel %vm940, %v980, %v981
        %v983 = vrot.slane %v981, 2
        %v984 = vrot.slane %v777, 7
        %v985 = vsel %vm940, %v983, %v984
        %v986 = vrot.slane %v984, 2
        %v987 = vrot.slane %v932, 7
        %v988 = vsel %vm940, %v986, %v987
        %v989 = vrot.slane %v778, 7
        %v990 = vrot.slane %v989, 2
        %v991 = vrot.slane %v797, 7
        %v992 = vsel %vm940, %v990, %v991
        %v993 = vrot.slane %v991, 2
        %v994 = vrot.slane %v798, 7
        %v995 = vsel %vm940, %v993, %v994
        %v996 = vrot.slane %v994, 2
        %v997 = vrot.slane %v799, 7
        %v998 = vsel %vm940, %v996, %v997
        %v999 = vrot.slane %v997, 2
        %v1000 = vrot.slane %v779, 7
        %v1001 = vsel %vm940, %v999, %v1000
        %v1002 = vrot.slane %v1000, 2
        %v1003 = vrot.slane %v933, 7
        %v1004 = vsel %vm940, %v1002, %v1003
        %s1005 = scalar_lea.vmem %s3, 8
        %v1006 = vld [vmem:[%s1005] sm:$0xff]
        %1007 = vst [vmem:[#allocation1] ss:$4 sm:$0xff] %v944
        %s1008 = scalar_lea.vmem [#allocation1], 1
        %1009 = vst [vmem:[%s1008] ss:$4 sm:$0xff] %v947
        %s1010 = scalar_lea.vmem [#allocation1], 2
        %1011 = vst [vmem:[%s1010] ss:$4 sm:$0xff] %v950
        %s1012 = scalar_lea.vmem [#allocation1], 3
        %1013 = vst [vmem:[%s1012] ss:$4 sm:$0xff] %v953
        %s1014 = scalar_lea.vmem [#allocation1], 32
        %1015 = vst [vmem:[%s1014] ss:$4 sm:$0xff] %v956
        %s1016 = scalar_lea.vmem [#allocation1], 33
        %1017 = vst [vmem:[%s1016] ss:$4 sm:$0xff] %v960
        %s1018 = scalar_lea.vmem [#allocation1], 34
        %1019 = vst [vmem:[%s1018] ss:$4 sm:$0xff] %v963
        %s1020 = scalar_lea.vmem [#allocation1], 35
        %1021 = vst [vmem:[%s1020] ss:$4 sm:$0xff] %v966
        %v1022 = vld.sshfl [vmem:[#allocation1] sm:$0xff pattern:$0x73625140]
        %v1023 = vld.sshfl [vmem:[#allocation1 + $0x20] sm:$0xff pattern:$0x73625140]
        %1024 = vst [vmem:[#allocation1] ss:$4 sm:$0xff] %v969
        %1025 = vst [vmem:[%s1008] ss:$4 sm:$0xff] %v972
        %1026 = vst [vmem:[%s1010] ss:$4 sm:$0xff] %v976
        %1027 = vst [vmem:[%s1012] ss:$4 sm:$0xff] %v979
        %1028 = vst [vmem:[%s1014] ss:$4 sm:$0xff] %v982
        %1029 = vst [vmem:[%s1016] ss:$4 sm:$0xff] %v985
        %1030 = vst [vmem:[%s1018] ss:$4 sm:$0xff] %v988
        %1031 = vst [vmem:[%s1020] ss:$4 sm:$0xff] %v992
        %v1032 = vld.sshfl [vmem:[#allocation1] sm:$0xff pattern:$0x73625140]
        %v1033 = vld.sshfl [vmem:[#allocation1 + $0x20] sm:$0xff pattern:$0x73625140]
        %1034 = vst [vmem:[#allocation1] ss:$4 sm:$0xff] %v995
        %1035 = vst [vmem:[%s1008] ss:$4 sm:$0xff] %v998
        %1036 = vst [vmem:[%s1010] ss:$4 sm:$0xff] %v1001
        %1037 = vst [vmem:[%s1012] ss:$4 sm:$0xff] %v1004
        %v1038 = vld.sshfl [vmem:[#allocation1] sm:$0xff pattern:$0x73625140]
        %v1039 = vsel %vm411, %v1022, 0
        %v1041 = vsel %vm411, %v1023, 0
        %v1043 = vsel %vm411, %v1032, 0
        %v1045 = vsel %vm411, %v1033, 0
        %v1047 = vsel %vm411, %v1038, 0
        %1049 = vmatpush.msra.mxu0 0.0
        %1050 = vmatpush.msra.mxu0 0.0
        %1051 = vmatpush.msra.mxu0 0.0
        %1052 = vmatpush.msra.mxu0 0.0
        %1053 = vmatpush.msra.mxu0 0.0
        %1054 = vmatpush.msra.mxu0 0.0
        %1055 = vmatpush.msra.mxu0 0.0
        %1056 = vmatpush.msra.mxu0 0.0
        %1057 = vmatpush.msra.mxu0 0.0
        %1058 = vmatpush.msra.mxu0 0.0
        %1059 = vmatpush.msra.mxu0 0.0
        %1060 = vmatpush.msra.mxu0 0.0
        %1061 = vmatpush.msra.mxu0 0.0
        %1062 = vmatpush.msra.mxu0 0.0
        %1063 = vmatpush.msra.mxu0 0.0
        %1064 = vmatpush.msra.mxu0 %v1006
        %1065 = vmatmul.f32.gmra.mxu0 %v1039
        %v1066 = vpop.f32.mrf.mxu0
        %v1067 = vadd.f32 0.0, %v1066
        %1068 = vmatmul.f32.gmra.mxu0 %v1041
        %v1069 = vpop.f32.mrf.mxu0
        %v1070 = vadd.f32 0.0, %v1069
        %1071 = vmatmul.f32.gmra.mxu0 %v1043
        %v1072 = vpop.f32.mrf.mxu0
        %v1073 = vadd.f32 0.0, %v1072
        %1074 = vmatmul.f32.gmra.mxu0 %v1045
        %v1075 = vpop.f32.mrf.mxu0
        %v1076 = vadd.f32 0.0, %v1075
        %1077 = vmatmul.f32.gmra.mxu0 %v1047
        %v1078 = vpop.f32.mrf.mxu0
        %v1079 = vadd.f32 0.0, %v1078
        %1080 = vdwg.mxu0
        %v1086 = vrot.slane %v1067, 2
        %v1087 = vrot.slane %v1067, 4
        %v1088 = vrot.slane %v1067, 6
        %v1089 = vrot.slane %v1070, 2
        %v1090 = vrot.slane %v1070, 4
        %v1091 = vrot.slane %v1070, 6
        %v1092 = vrot.slane %v1073, 2
        %v1093 = vrot.slane %v1073, 4
        %v1094 = vrot.slane %v1073, 6
        %v1095 = vrot.slane %v1076, 2
        %v1096 = vrot.slane %v1076, 4
        %v1097 = vrot.slane %v1076, 6
        %v1098 = vrot.slane %v1079, 2
        %v1099 = vrot.slane %v1079, 4
        %v1100 = vrot.slane %v1079, 6
        %v1116 = vadd.f32 %v910, %v1067
        %v1117 = vadd.f32 %v911, %v1086
        %v1118 = vadd.f32 %v912, %v1087
        %v1119 = vadd.f32 %v913, %v1088
        %v1120 = vadd.f32 %v914, %v1070
        %v1121 = vadd.f32 %v915, %v1089
        %v1122 = vadd.f32 %v916, %v1090
        %v1123 = vadd.f32 %v917, %v1091
        %v1124 = vadd.f32 %v918, %v1073
        %v1125 = vadd.f32 %v919, %v1092
        %v1126 = vadd.f32 %v920, %v1093
        %v1127 = vadd.f32 %v921, %v1094
        %v1128 = vadd.f32 %v922, %v1076
        %v1129 = vadd.f32 %v923, %v1095
        %v1130 = vadd.f32 %v924, %v1096
        %v1131 = vadd.f32 %v925, %v1097
        %v1132 = vadd.f32 %v926, %v1079
        %v1133 = vadd.f32 %v927, %v1098
        %v1134 = vadd.f32 %v928, %v1099
        %v1135 = vadd.f32 %v929, %v1100
        %1136 = vst.sshfl [vmem:[#allocation1] sm:$0xff pattern:$0x73625140] %v772
        %1137 = vst.sshfl [vmem:[#allocation1 + $0x20] sm:$0xff pattern:$0x73625140] %v773
        %s1138 = scalar_lea.vmem [#allocation1], 1
        %v1139 = vld [vmem:[%s1138] ss:$4 sm:$0xff]
        %s1140 = scalar_lea.vmem [#allocation1], 2
        %v1141 = vld [vmem:[%s1140] ss:$4 sm:$0xff]
        %s1142 = scalar_lea.vmem [#allocation1], 3
        %v1143 = vld [vmem:[%s1142] ss:$4 sm:$0xff]
        %s1144 = scalar_lea.vmem [#allocation1], 32
        %v1145 = vld [vmem:[%s1144] ss:$4 sm:$0xff]
        %s1146 = scalar_lea.vmem [#allocation1], 33
        %v1147 = vld [vmem:[%s1146] ss:$4 sm:$0xff]
        %1148 = vst.sshfl [vmem:[#allocation1] sm:$0xff pattern:$0x73625140] %v774
        %1149 = vst.sshfl [vmem:[#allocation1 + $0x20] sm:$0xff pattern:$0x73625140] %v775
        %v1150 = vld [vmem:[%s1138] ss:$4 sm:$0xff]
        %v1151 = vld [vmem:[%s1140] ss:$4 sm:$0xff]
        %v1152 = vld [vmem:[%s1142] ss:$4 sm:$0xff]
        %v1153 = vld [vmem:[%s1144] ss:$4 sm:$0xff]
        %v1154 = vld [vmem:[%s1146] ss:$4 sm:$0xff]
        %1155 = vst.sshfl [vmem:[#allocation1] sm:$0xff pattern:$0x73625140] %v776
        %1156 = vst.sshfl [vmem:[#allocation1 + $0x20] sm:$0xff pattern:$0x73625140] %v777
        %v1157 = vld [vmem:[%s1138] ss:$4 sm:$0xff]
        %v1158 = vld [vmem:[%s1140] ss:$4 sm:$0xff]
        %v1159 = vld [vmem:[%s1142] ss:$4 sm:$0xff]
        %v1160 = vld [vmem:[%s1144] ss:$4 sm:$0xff]
        %v1161 = vld [vmem:[%s1146] ss:$4 sm:$0xff]
        %1162 = vst.sshfl [vmem:[#allocation1] sm:$0xff pattern:$0x73625140] %v778
        %1163 = vst.sshfl [vmem:[#allocation1 + $0x20] sm:$0xff pattern:$0x73625140] %v779
        %v1164 = vld [vmem:[%s1138] ss:$4 sm:$0xff]
        %v1165 = vld [vmem:[%s1140] ss:$4 sm:$0xff]
        %v1166 = vld [vmem:[%s1142] ss:$4 sm:$0xff]
        %v1167 = vld [vmem:[%s1144] ss:$4 sm:$0xff]
        %v1168 = vld [vmem:[%s1146] ss:$4 sm:$0xff]
        %s1169 = scalar_lea.vmem %s3, 16
        %v1170 = vld [vmem:[%s1169] sm:$0xff]
        %1171 = vst [vmem:[#allocation1] ss:$4 sm:$0xff] %v1139
        %s1172 = scalar_lea.vmem [#allocation1], 1
        %1173 = vst [vmem:[%s1172] ss:$4 sm:$0xff] %v1141
        %s1174 = scalar_lea.vmem [#allocation1], 2
        %1175 = vst [vmem:[%s1174] ss:$4 sm:$0xff] %v1143
        %s1176 = scalar_lea.vmem [#allocation1], 3
        %1177 = vst [vmem:[%s1176] ss:$4 sm:$0xff] %v1145
        %s1178 = scalar_lea.vmem [#allocation1], 32
        %1179 = vst [vmem:[%s1178] ss:$4 sm:$0xff] %v1147
        %s1180 = scalar_lea.vmem [#allocation1], 33
        %1181 = vst [vmem:[%s1180] ss:$4 sm:$0xff] %v1150
        %s1182 = scalar_lea.vmem [#allocation1], 34
        %1183 = vst [vmem:[%s1182] ss:$4 sm:$0xff] %v1151
        %s1184 = scalar_lea.vmem [#allocation1], 35
        %1185 = vst [vmem:[%s1184] ss:$4 sm:$0xff] %v1152
        %v1186 = vld.sshfl [vmem:[#allocation1] sm:$0xff pattern:$0x73625140]
        %v1187 = vld.sshfl [vmem:[#allocation1 + $0x20] sm:$0xff pattern:$0x73625140]
        %1188 = vst [vmem:[#allocation1] ss:$4 sm:$0xff] %v1153
        %1189 = vst [vmem:[%s1172] ss:$4 sm:$0xff] %v1154
        %1190 = vst [vmem:[%s1174] ss:$4 sm:$0xff] %v1157
        %1191 = vst [vmem:[%s1176] ss:$4 sm:$0xff] %v1158
        %1192 = vst [vmem:[%s1178] ss:$4 sm:$0xff] %v1159
        %1193 = vst [vmem:[%s1180] ss:$4 sm:$0xff] %v1160
        %1194 = vst [vmem:[%s1182] ss:$4 sm:$0xff] %v1161
        %1195 = vst [vmem:[%s1184] ss:$4 sm:$0xff] %v1164
        %v1196 = vld.sshfl [vmem:[#allocation1] sm:$0xff pattern:$0x73625140]
        %v1197 = vld.sshfl [vmem:[#allocation1 + $0x20] sm:$0xff pattern:$0x73625140]
        %1198 = vst [vmem:[#allocation1] ss:$4 sm:$0xff] %v1165
        %1199 = vst [vmem:[%s1172] ss:$4 sm:$0xff] %v1166
        %1200 = vst [vmem:[%s1174] ss:$4 sm:$0xff] %v1167
        %1201 = vst [vmem:[%s1176] ss:$4 sm:$0xff] %v1168
        %v1202 = vld.sshfl [vmem:[#allocation1] sm:$0xff pattern:$0x73625140]
        %v1203 = vsel %vm411, %v1186, 0
        %v1205 = vsel %vm411, %v1187, 0
        %v1207 = vsel %vm411, %v1196, 0
        %v1209 = vsel %vm411, %v1197, 0
        %v1211 = vsel %vm411, %v1202, 0
        %1213 = vmatpush.msra.mxu0 0.0
        %1214 = vmatpush.msra.mxu0 0.0
        %1215 = vmatpush.msra.mxu0 0.0
        %1216 = vmatpush.msra.mxu0 0.0
        %1217 = vmatpush.msra.mxu0 0.0
        %1218 = vmatpush.msra.mxu0 0.0
        %1219 = vmatpush.msra.mxu0 0.0
        %1220 = vmatpush.msra.mxu0 0.0
        %1221 = vmatpush.msra.mxu0 0.0
        %1222 = vmatpush.msra.mxu0 0.0
        %1223 = vmatpush.msra.mxu0 0.0
        %1224 = vmatpush.msra.mxu0 0.0
        %1225 = vmatpush.msra.mxu0 0.0
        %1226 = vmatpush.msra.mxu0 0.0
        %1227 = vmatpush.msra.mxu0 0.0
        %1228 = vmatpush.msra.mxu0 %v1170
        %1229 = vmatmul.f32.gmra.mxu0 %v1203
        %v1230 = vpop.f32.mrf.mxu0
        %v1231 = vadd.f32 0.0, %v1230
        %1232 = vmatmul.f32.gmra.mxu0 %v1205
        %v1233 = vpop.f32.mrf.mxu0
        %v1234 = vadd.f32 0.0, %v1233
        %1235 = vmatmul.f32.gmra.mxu0 %v1207
        %v1236 = vpop.f32.mrf.mxu0
        %v1237 = vadd.f32 0.0, %v1236
        %1238 = vmatmul.f32.gmra.mxu0 %v1209
        %v1239 = vpop.f32.mrf.mxu0
        %v1240 = vadd.f32 0.0, %v1239
        %1241 = vmatmul.f32.gmra.mxu0 %v1211
        %v1242 = vpop.f32.mrf.mxu0
        %v1243 = vadd.f32 0.0, %v1242
        %1244 = vdwg.mxu0
        %v1250 = vrot.slane %v1231, 2
        %v1251 = vrot.slane %v1231, 4
        %v1252 = vrot.slane %v1231, 6
        %v1253 = vrot.slane %v1234, 2
        %v1254 = vrot.slane %v1234, 4
        %v1255 = vrot.slane %v1234, 6
        %v1256 = vrot.slane %v1237, 2
        %v1257 = vrot.slane %v1237, 4
        %v1258 = vrot.slane %v1237, 6
        %v1259 = vrot.slane %v1240, 2
        %v1260 = vrot.slane %v1240, 4
        %v1261 = vrot.slane %v1240, 6
        %v1262 = vrot.slane %v1243, 2
        %v1263 = vrot.slane %v1243, 4
        %v1264 = vrot.slane %v1243, 6
        %v1280 = vadd.f32 %v1116, %v1231
        %v1281 = vadd.f32 %v1117, %v1250
        %v1282 = vadd.f32 %v1118, %v1251
        %v1283 = vadd.f32 %v1119, %v1252
        %v1284 = vadd.f32 %v1120, %v1234
        %v1285 = vadd.f32 %v1121, %v1253
        %v1286 = vadd.f32 %v1122, %v1254
        %v1287 = vadd.f32 %v1123, %v1255
        %v1288 = vadd.f32 %v1124, %v1237
        %v1289 = vadd.f32 %v1125, %v1256
        %v1290 = vadd.f32 %v1126, %v1257
        %v1291 = vadd.f32 %v1127, %v1258
        %v1292 = vadd.f32 %v1128, %v1240
        %v1293 = vadd.f32 %v1129, %v1259
        %v1294 = vadd.f32 %v1130, %v1260
        %v1295 = vadd.f32 %v1131, %v1261
        %v1296 = vadd.f32 %v1132, %v1243
        %v1297 = vadd.f32 %v1133, %v1262
        %v1298 = vadd.f32 %v1134, %v1263
        %v1299 = vadd.f32 %v1135, %v1264
        %v1300 = vld [vmem:[%s4] sm:$0x1]
        %v1302 = vperm.slane %v1300, 0
        %v1304 = vrot.slane %v1302, 2
        %v1305 = vrot.slane %v1302, 4
        %v1306 = vrot.slane %v1302, 6
        %v1310 = vadd.f32 %v1280, %v1302
        %v1311 = vadd.f32 %v1281, %v1304
        %v1312 = vadd.f32 %v1282, %v1305
        %v1313 = vadd.f32 %v1283, %v1306
        %v1314 = vadd.f32 %v1284, %v1302
        %v1315 = vadd.f32 %v1285, %v1302
        %v1316 = vadd.f32 %v1286, %v1304
        %v1317 = vadd.f32 %v1287, %v1305
        %v1318 = vadd.f32 %v1288, %v1306
        %v1319 = vadd.f32 %v1289, %v1302
        %v1320 = vadd.f32 %v1290, %v1302
        %v1321 = vadd.f32 %v1291, %v1304
        %v1322 = vadd.f32 %v1292, %v1305
        %v1323 = vadd.f32 %v1293, %v1306
        %v1324 = vadd.f32 %v1294, %v1302
        %v1325 = vadd.f32 %v1295, %v1302
        %v1326 = vadd.f32 %v1296, %v1304
        %v1327 = vadd.f32 %v1297, %v1305
        %v1328 = vadd.f32 %v1298, %v1306
        %v1329 = vadd.f32 %v1299, %v1302
        %v1330 = vld [vmem:[%s5] sm:$0xf]
        %v1331 = vld [vmem:[%s6] sm:$0xf]
        %1352 = vst [vmem:[#allocation1] ss:$4 sm:$0xff] %v1310
        %s1353 = scalar_lea.vmem [#allocation1], 1
        %1354 = vst [vmem:[%s1353] ss:$4 sm:$0xff] %v1311
        %s1355 = scalar_lea.vmem [#allocation1], 2
        %1356 = vst [vmem:[%s1355] ss:$4 sm:$0xff] %v1312
        %s1357 = scalar_lea.vmem [#allocation1], 3
        %1358 = vst [vmem:[%s1357] ss:$4 sm:$0xff] %v1313
        %s1359 = scalar_lea.vmem [#allocation1], 32
        %1360 = vst [vmem:[%s1359] ss:$4 sm:$0xff] %v1314
        %v1361 = vld.sshfl [vmem:[#allocation1] sm:$0xff pattern:$0x73625140]
        %v1362 = vld.sshfl [vmem:[#allocation1 + $0x20] sm:$0xff pattern:$0x73625140]
        %1363 = vst [vmem:[#allocation1] ss:$4 sm:$0xff] %v1315
        %1364 = vst [vmem:[%s1353] ss:$4 sm:$0xff] %v1316
        %1365 = vst [vmem:[%s1355] ss:$4 sm:$0xff] %v1317
        %1366 = vst [vmem:[%s1357] ss:$4 sm:$0xff] %v1318
        %1367 = vst [vmem:[%s1359] ss:$4 sm:$0xff] %v1319
        %v1368 = vld.sshfl [vmem:[#allocation1] sm:$0xff pattern:$0x73625140]
        %v1369 = vld.sshfl [vmem:[#allocation1 + $0x20] sm:$0xff pattern:$0x73625140]
        %1370 = vst [vmem:[#allocation1] ss:$4 sm:$0xff] %v1320
        %1371 = vst [vmem:[%s1353] ss:$4 sm:$0xff] %v1321
        %1372 = vst [vmem:[%s1355] ss:$4 sm:$0xff] %v1322
        %1373 = vst [vmem:[%s1357] ss:$4 sm:$0xff] %v1323
        %1374 = vst [vmem:[%s1359] ss:$4 sm:$0xff] %v1324
        %v1375 = vld.sshfl [vmem:[#allocation1] sm:$0xff pattern:$0x73625140]
        %v1376 = vld.sshfl [vmem:[#allocation1 + $0x20] sm:$0xff pattern:$0x73625140]
        %1377 = vst [vmem:[#allocation1] ss:$4 sm:$0xff] %v1325
        %1378 = vst [vmem:[%s1353] ss:$4 sm:$0xff] %v1326
        %1379 = vst [vmem:[%s1355] ss:$4 sm:$0xff] %v1327
        %1380 = vst [vmem:[%s1357] ss:$4 sm:$0xff] %v1328
        %1381 = vst [vmem:[%s1359] ss:$4 sm:$0xff] %v1329
        %v1382 = vld.sshfl [vmem:[#allocation1] sm:$0xff pattern:$0x73625140]
        %v1383 = vld.sshfl [vmem:[#allocation1 + $0x20] sm:$0xff pattern:$0x73625140]
        %v1392 = vsel %vm411, %v1361, 0.0
        %1393 = vadd.xlane.f32.xlu0 %v1392
        %v1394 = vpop.xlane.xlu0 %1393
        %vm1395 = vcmask 58368
        %v1396 = vsel %vm1395, %v1362, 0.0
        %1397 = vadd.xlane.f32.xlu0 %v1396
        %v1398 = vpop.xlane.xlu0 %1397
        %v1399 = vsel %vm411, %v1368, 0.0
        %1400 = vadd.xlane.f32.xlu0 %v1399
        %v1401 = vpop.xlane.xlu0 %1400
        %v1402 = vsel %vm1395, %v1369, 0.0
        %1403 = vadd.xlane.f32.xlu0 %v1402
        %v1404 = vpop.xlane.xlu0 %1403
        %v1405 = vsel %vm411, %v1375, 0.0
        %1406 = vadd.xlane.f32.xlu0 %v1405
        %v1407 = vpop.xlane.xlu0 %1406
        %v1408 = vsel %vm1395, %v1376, 0.0
        %1409 = vadd.xlane.f32.xlu0 %v1408
        %v1410 = vpop.xlane.xlu0 %1409
        %v1411 = vsel %vm411, %v1382, 0.0
        %1412 = vadd.xlane.f32.xlu0 %v1411
        %v1413 = vpop.xlane.xlu0 %1412
        %v1414 = vsel %vm1395, %v1383, 0.0
        %1415 = vadd.xlane.f32.xlu0 %v1414
        %v1416 = vpop.xlane.xlu0 %1415
        %v1417 = vmul.f32 %v1394, %v443
        %v1418 = vmul.f32 %v1398, %v443
        %v1419 = vmul.f32 %v1401, %v443
        %v1420 = vmul.f32 %v1404, %v443
        %v1421 = vmul.f32 %v1407, %v443
        %v1422 = vmul.f32 %v1410, %v443
        %v1423 = vmul.f32 %v1413, %v443
        %v1424 = vmul.f32 %v1416, %v443
        %v1425 = vadd.f32 %v1417, %v1419
        %v1426 = vadd.f32 %v1425, %v1421
        %v1427 = vadd.f32 %v1426, %v1423
        %vm1428 = vcmask 1041408
        %v1429 = vsel %vm1428, %v1418, 0.0
        %v1430 = vsel %vm1428, %v1420, 0.0
        %v1431 = vadd.f32 %v1429, %v1430
        %v1432 = vsel %vm1428, %v1422, 0.0
        %v1433 = vadd.f32 %v1431, %v1432
        %v1434 = vsel %vm1428, %v1424, 0.0
        %v1435 = vadd.f32 %v1433, %v1434
        %v1436 = vmul.f32 %v1427, %v469
        %v1437 = vmul.f32 %v1435, %v469
        %v1441 = vunpack.c.l.s4 269488144
        %v1442 = vunpack.c.0.s8 %v1441
        %v1443 = vperm.slane %v1436, %v1442
        %v1445 = vunpack.c.l.s4 842150450
        %v1446 = vunpack.c.0.s8 %v1445
        %v1447 = vperm.slane %v1436, %v1446
        %v1449 = vunpack.c.l.s4 1414812756
        %v1450 = vunpack.c.0.s8 %v1449
        %v1451 = vperm.slane %v1436, %v1450
        %v1453 = vunpack.c.l.s4 1987475062
        %v1454 = vunpack.c.0.s8 %v1453
        %v1455 = vperm.slane %v1436, %v1454
        %v1457 = vunpack.c.l.s4 269488144
        %v1458 = vunpack.c.0.s8 %v1457
        %v1459 = vperm.slane %v1437, %v1458
        %v1465 = vsub.f32 %v1310, %v1443
        %v1466 = vsub.f32 %v1311, %v1447
        %v1467 = vsub.f32 %v1312, %v1451
        %v1468 = vsub.f32 %v1313, %v1455
        %v1469 = vsub.f32 %v1314, %v1459
        %v1470 = vsub.f32 %v1315, %v1443
        %v1471 = vsub.f32 %v1316, %v1447
        %v1472 = vsub.f32 %v1317, %v1451
        %v1473 = vsub.f32 %v1318, %v1455
        %v1474 = vsub.f32 %v1319, %v1459
        %v1475 = vsub.f32 %v1320, %v1443
        %v1476 = vsub.f32 %v1321, %v1447
        %v1477 = vsub.f32 %v1322, %v1451
        %v1478 = vsub.f32 %v1323, %v1455
        %v1479 = vsub.f32 %v1324, %v1459
        %v1480 = vsub.f32 %v1325, %v1443
        %v1481 = vsub.f32 %v1326, %v1447
        %v1482 = vsub.f32 %v1327, %v1451
        %v1483 = vsub.f32 %v1328, %v1455
        %v1484 = vsub.f32 %v1329, %v1459
        %v1485 = vmul.f32 %v1465, %v1465
        %v1486 = vmul.f32 %v1466, %v1466
        %v1487 = vmul.f32 %v1467, %v1467
        %v1488 = vmul.f32 %v1468, %v1468
        %v1489 = vmul.f32 %v1469, %v1469
        %v1490 = vmul.f32 %v1470, %v1470
        %v1491 = vmul.f32 %v1471, %v1471
        %v1492 = vmul.f32 %v1472, %v1472
        %v1493 = vmul.f32 %v1473, %v1473
        %v1494 = vmul.f32 %v1474, %v1474
        %v1495 = vmul.f32 %v1475, %v1475
        %v1496 = vmul.f32 %v1476, %v1476
        %v1497 = vmul.f32 %v1477, %v1477
        %v1498 = vmul.f32 %v1478, %v1478
        %v1499 = vmul.f32 %v1479, %v1479
        %v1500 = vmul.f32 %v1480, %v1480
        %v1501 = vmul.f32 %v1481, %v1481
        %v1502 = vmul.f32 %v1482, %v1482
        %v1503 = vmul.f32 %v1483, %v1483
        %v1504 = vmul.f32 %v1484, %v1484
        %1525 = vst [vmem:[#allocation1] ss:$4 sm:$0xff] %v1485
        %s1526 = scalar_lea.vmem [#allocation1], 1
        %1527 = vst [vmem:[%s1526] ss:$4 sm:$0xff] %v1486
        %s1528 = scalar_lea.vmem [#allocation1], 2
        %1529 = vst [vmem:[%s1528] ss:$4 sm:$0xff] %v1487
        %s1530 = scalar_lea.vmem [#allocation1], 3
        %1531 = vst [vmem:[%s1530] ss:$4 sm:$0xff] %v1488
        %s1532 = scalar_lea.vmem [#allocation1], 32
        %1533 = vst [vmem:[%s1532] ss:$4 sm:$0xff] %v1489
        %v1534 = vld.sshfl [vmem:[#allocation1] sm:$0xff pattern:$0x73625140]
        %v1535 = vld.sshfl [vmem:[#allocation1 + $0x20] sm:$0xff pattern:$0x73625140]
        %1536 = vst [vmem:[#allocation1] ss:$4 sm:$0xff] %v1490
        %1537 = vst [vmem:[%s1526] ss:$4 sm:$0xff] %v1491
        %1538 = vst [vmem:[%s1528] ss:$4 sm:$0xff] %v1492
        %1539 = vst [vmem:[%s1530] ss:$4 sm:$0xff] %v1493
        %1540 = vst [vmem:[%s1532] ss:$4 sm:$0xff] %v1494
        %v1541 = vld.sshfl [vmem:[#allocation1] sm:$0xff pattern:$0x73625140]
        %v1542 = vld.sshfl [vmem:[#allocation1 + $0x20] sm:$0xff pattern:$0x73625140]
        %1543 = vst [vmem:[#allocation1] ss:$4 sm:$0xff] %v1495
        %1544 = vst [vmem:[%s1526] ss:$4 sm:$0xff] %v1496
        %1545 = vst [vmem:[%s1528] ss:$4 sm:$0xff] %v1497
        %1546 = vst [vmem:[%s1530] ss:$4 sm:$0xff] %v1498
        %1547 = vst [vmem:[%s1532] ss:$4 sm:$0xff] %v1499
        %v1548 = vld.sshfl [vmem:[#allocation1] sm:$0xff pattern:$0x73625140]
        %v1549 = vld.sshfl [vmem:[#allocation1 + $0x20] sm:$0xff pattern:$0x73625140]
        %1550 = vst [vmem:[#allocation1] ss:$4 sm:$0xff] %v1500
        %1551 = vst [vmem:[%s1526] ss:$4 sm:$0xff] %v1501
        %1552 = vst [vmem:[%s1528] ss:$4 sm:$0xff] %v1502
        %1553 = vst [vmem:[%s1530] ss:$4 sm:$0xff] %v1503
        %1554 = vst [vmem:[%s1532] ss:$4 sm:$0xff] %v1504
        %v1555 = vld.sshfl [vmem:[#allocation1] sm:$0xff pattern:$0x73625140]
        %v1556 = vld.sshfl [vmem:[#allocation1 + $0x20] sm:$0xff pattern:$0x73625140]
        %v1565 = vsel %vm411, %v1534, 0.0
        %1566 = vadd.xlane.f32.xlu0 %v1565
        %v1567 = vpop.xlane.xlu0 %1566
        %v1568 = vsel %vm1395, %v1535, 0.0
        %1569 = vadd.xlane.f32.xlu0 %v1568
        %v1570 = vpop.xlane.xlu0 %1569
        %v1571 = vsel %vm411, %v1541, 0.0
        %1572 = vadd.xlane.f32.xlu0 %v1571
        %v1573 = vpop.xlane.xlu0 %1572
        %v1574 = vsel %vm1395, %v1542, 0.0
        %1575 = vadd.xlane.f32.xlu0 %v1574
        %v1576 = vpop.xlane.xlu0 %1575
        %v1577 = vsel %vm411, %v1548, 0.0
        %1578 = vadd.xlane.f32.xlu0 %v1577
        %v1579 = vpop.xlane.xlu0 %1578
        %v1580 = vsel %vm1395, %v1549, 0.0
        %1581 = vadd.xlane.f32.xlu0 %v1580
        %v1582 = vpop.xlane.xlu0 %1581
        %v1583 = vsel %vm411, %v1555, 0.0
        %1584 = vadd.xlane.f32.xlu0 %v1583
        %v1585 = vpop.xlane.xlu0 %1584
        %v1586 = vsel %vm1395, %v1556, 0.0
        %1587 = vadd.xlane.f32.xlu0 %v1586
        %v1588 = vpop.xlane.xlu0 %1587
        %v1589 = vmul.f32 %v1567, %v443
        %v1590 = vmul.f32 %v1570, %v443
        %v1591 = vmul.f32 %v1573, %v443
        %v1592 = vmul.f32 %v1576, %v443
        %v1593 = vmul.f32 %v1579, %v443
        %v1594 = vmul.f32 %v1582, %v443
        %v1595 = vmul.f32 %v1585, %v443
        %v1596 = vmul.f32 %v1588, %v443
        %v1597 = vadd.f32 %v1589, %v1591
        %v1598 = vadd.f32 %v1597, %v1593
        %v1599 = vadd.f32 %v1598, %v1595
        %v1600 = vsel %vm1428, %v1590, 0.0
        %v1601 = vsel %vm1428, %v1592, 0.0
        %v1602 = vadd.f32 %v1600, %v1601
        %v1603 = vsel %vm1428, %v1594, 0.0
        %v1604 = vadd.f32 %v1602, %v1603
        %v1605 = vsel %vm1428, %v1596, 0.0
        %v1606 = vadd.f32 %v1604, %v1605
        %v1607 = vmul.f32 %v1599, %v469
        %v1608 = vmul.f32 %v1606, %v469
        %v1609 = vadd.f32 %v1607, 1e-05
        %v1610 = vadd.f32 %v1608, 1e-05
        %v1611 = vrsqrt.pop %v1609
        %v1612 = vmul.f32 %v1611, %v1609
        %v1613 = vmul.f32 %v1612, %v1611
        %v1614 = vmul.f32 0.5, %v1613
        %v1615 = vsub.f32 1.5, %v1614
        %v1616 = vmul.f32 %v1611, %v1615
        %vm1617 = vweird.f32 %v1609
        %vm1618 = vweird.f32 %v1611
        %vm1619 = vmor %vm1617, %vm1618
        %v1620 = vsel %vm1619, %v1611, %v1616
        %v1621 = vrsqrt.pop %v1610
        %v1622 = vmul.f32 %v1621, %v1610
        %v1623 = vmul.f32 %v1622, %v1621
        %v1624 = vmul.f32 0.5, %v1623
        %v1625 = vsub.f32 1.5, %v1624
        %v1626 = vmul.f32 %v1621, %v1625
        %vm1627 = vweird.f32 %v1610
        %vm1628 = vweird.f32 %v1621
        %vm1629 = vmor %vm1627, %vm1628
        %v1630 = vsel %vm1629, %v1621, %v1626
        %v1634 = vunpack.c.l.s4 269488144
        %v1635 = vunpack.c.0.s8 %v1634
        %v1636 = vperm.slane %v1620, %v1635
        %v1638 = vunpack.c.l.s4 842150450
        %v1639 = vunpack.c.0.s8 %v1638
        %v1640 = vperm.slane %v1620, %v1639
        %v1642 = vunpack.c.l.s4 1414812756
        %v1643 = vunpack.c.0.s8 %v1642
        %v1644 = vperm.slane %v1620, %v1643
        %v1646 = vunpack.c.l.s4 1987475062
        %v1647 = vunpack.c.0.s8 %v1646
        %v1648 = vperm.slane %v1620, %v1647
        %v1650 = vunpack.c.l.s4 269488144
        %v1651 = vunpack.c.0.s8 %v1650
        %v1652 = vperm.slane %v1630, %v1651
        %v1658 = vmul.f32 %v1465, %v1636
        %v1659 = vmul.f32 %v1466, %v1640
        %v1660 = vmul.f32 %v1467, %v1644
        %v1661 = vmul.f32 %v1468, %v1648
        %v1662 = vmul.f32 %v1469, %v1652
        %v1663 = vmul.f32 %v1470, %v1636
        %v1664 = vmul.f32 %v1471, %v1640
        %v1665 = vmul.f32 %v1472, %v1644
        %v1666 = vmul.f32 %v1473, %v1648
        %v1667 = vmul.f32 %v1474, %v1652
        %v1668 = vmul.f32 %v1475, %v1636
        %v1669 = vmul.f32 %v1476, %v1640
        %v1670 = vmul.f32 %v1477, %v1644
        %v1671 = vmul.f32 %v1478, %v1648
        %v1672 = vmul.f32 %v1479, %v1652
        %v1673 = vmul.f32 %v1480, %v1636
        %v1674 = vmul.f32 %v1481, %v1640
        %v1675 = vmul.f32 %v1482, %v1644
        %v1676 = vmul.f32 %v1483, %v1648
        %v1677 = vmul.f32 %v1484, %v1652
        %v1679 = vrot.slane %v1330, 1
        %v1680 = vrot.slane %v1330, 2
        %v1681 = vrot.slane %v1330, 3
        %v1682 = vperm.slane %v1330, 0
        %v1683 = vperm.slane %v1679, 0
        %v1684 = vperm.slane %v1680, 0
        %v1685 = vperm.slane %v1681, 0
        %v1690 = vrot.slane %v1682, 2
        %v1691 = vrot.slane %v1682, 4
        %v1692 = vrot.slane %v1682, 6
        %v1693 = vrot.slane %v1683, 2
        %v1694 = vrot.slane %v1683, 4
        %v1695 = vrot.slane %v1683, 6
        %v1696 = vrot.slane %v1684, 2
        %v1697 = vrot.slane %v1684, 4
        %v1698 = vrot.slane %v1684, 6
        %v1699 = vrot.slane %v1685, 2
        %v1700 = vrot.slane %v1685, 4
        %v1701 = vrot.slane %v1685, 6
        %v1714 = vmul.f32 %v1658, %v1682
        %v1715 = vmul.f32 %v1659, %v1690
        %v1716 = vmul.f32 %v1660, %v1691
        %v1717 = vmul.f32 %v1661, %v1692
        %v1718 = vmul.f32 %v1662, %v1682
        %v1719 = vmul.f32 %v1663, %v1683
        %v1720 = vmul.f32 %v1664, %v1693
        %v1721 = vmul.f32 %v1665, %v1694
        %v1722 = vmul.f32 %v1666, %v1695
        %v1723 = vmul.f32 %v1667, %v1683
        %v1724 = vmul.f32 %v1668, %v1684
        %v1725 = vmul.f32 %v1669, %v1696
        %v1726 = vmul.f32 %v1670, %v1697
        %v1727 = vmul.f32 %v1671, %v1698
        %v1728 = vmul.f32 %v1672, %v1684
        %v1729 = vmul.f32 %v1673, %v1685
        %v1730 = vmul.f32 %v1674, %v1699
        %v1731 = vmul.f32 %v1675, %v1700
        %v1732 = vmul.f32 %v1676, %v1701
        %v1733 = vmul.f32 %v1677, %v1685
        %v1735 = vrot.slane %v1331, 1
        %v1736 = vrot.slane %v1331, 2
        %v1737 = vrot.slane %v1331, 3
        %v1738 = vperm.slane %v1331, 0
        %v1739 = vperm.slane %v1735, 0
        %v1740 = vperm.slane %v1736, 0
        %v1741 = vperm.slane %v1737, 0
        %v1746 = vrot.slane %v1738, 2
        %v1747 = vrot.slane %v1738, 4
        %v1748 = vrot.slane %v1738, 6
        %v1749 = vrot.slane %v1739, 2
        %v1750 = vrot.slane %v1739, 4
        %v1751 = vrot.slane %v1739, 6
        %v1752 = vrot.slane %v1740, 2
        %v1753 = vrot.slane %v1740, 4
        %v1754 = vrot.slane %v1740, 6
        %v1755 = vrot.slane %v1741, 2
        %v1756 = vrot.slane %v1741, 4
        %v1757 = vrot.slane %v1741, 6
        %v1770 = vadd.f32 %v1714, %v1738
        %v1771 = vadd.f32 %v1715, %v1746
        %v1772 = vadd.f32 %v1716, %v1747
        %v1773 = vadd.f32 %v1717, %v1748
        %v1774 = vadd.f32 %v1718, %v1738
        %v1775 = vadd.f32 %v1719, %v1739
        %v1776 = vadd.f32 %v1720, %v1749
        %v1777 = vadd.f32 %v1721, %v1750
        %v1778 = vadd.f32 %v1722, %v1751
        %v1779 = vadd.f32 %v1723, %v1739
        %v1780 = vadd.f32 %v1724, %v1740
        %v1781 = vadd.f32 %v1725, %v1752
        %v1782 = vadd.f32 %v1726, %v1753
        %v1783 = vadd.f32 %v1727, %v1754
        %v1784 = vadd.f32 %v1728, %v1740
        %v1785 = vadd.f32 %v1729, %v1741
        %v1786 = vadd.f32 %v1730, %v1755
        %v1787 = vadd.f32 %v1731, %v1756
        %v1788 = vadd.f32 %v1732, %v1757
        %v1789 = vadd.f32 %v1733, %v1741
        %v1790 = vld [vmem:[%s7] sm:$0xff]
        %v1791 = vld [vmem:[%s8] sm:$0x1]
        %v1793 = vperm.slane %v1791, 0
        %1815 = vst [vmem:[#allocation1] ss:$4 sm:$0xff] %v1770
        %s1816 = scalar_lea.vmem [#allocation1], 1
        %1817 = vst [vmem:[%s1816] ss:$4 sm:$0xff] %v1771
        %s1818 = scalar_lea.vmem [#allocation1], 2
        %1819 = vst [vmem:[%s1818] ss:$4 sm:$0xff] %v1772
        %s1820 = scalar_lea.vmem [#allocation1], 3
        %1821 = vst [vmem:[%s1820] ss:$4 sm:$0xff] %v1773
        %s1822 = scalar_lea.vmem [#allocation1], 32
        %1823 = vst [vmem:[%s1822] ss:$4 sm:$0xff] %v1774
        %s1824 = scalar_lea.vmem [#allocation1], 33
        %1825 = vst [vmem:[%s1824] ss:$4 sm:$0xff] %v1775
        %s1826 = scalar_lea.vmem [#allocation1], 34
        %1827 = vst [vmem:[%s1826] ss:$4 sm:$0xff] %v1776
        %s1828 = scalar_lea.vmem [#allocation1], 35
        %1829 = vst [vmem:[%s1828] ss:$4 sm:$0xff] %v1777
        %v1830 = vld.sshfl [vmem:[#allocation1] sm:$0xff pattern:$0x73625140]
        %v1831 = vld.sshfl [vmem:[#allocation1 + $0x20] sm:$0xff pattern:$0x73625140]
        %1832 = vst [vmem:[#allocation1] ss:$4 sm:$0xff] %v1778
        %1833 = vst [vmem:[%s1816] ss:$4 sm:$0xff] %v1779
        %1834 = vst [vmem:[%s1818] ss:$4 sm:$0xff] %v1780
        %1835 = vst [vmem:[%s1820] ss:$4 sm:$0xff] %v1781
        %1836 = vst [vmem:[%s1822] ss:$4 sm:$0xff] %v1782
        %1837 = vst [vmem:[%s1824] ss:$4 sm:$0xff] %v1783
        %1838 = vst [vmem:[%s1826] ss:$4 sm:$0xff] %v1784
        %1839 = vst [vmem:[%s1828] ss:$4 sm:$0xff] %v1785
        %v1840 = vld.sshfl [vmem:[#allocation1] sm:$0xff pattern:$0x73625140]
        %v1841 = vld.sshfl [vmem:[#allocation1 + $0x20] sm:$0xff pattern:$0x73625140]
        %1842 = vst [vmem:[#allocation1] ss:$4 sm:$0xff] %v1786
        %1843 = vst [vmem:[%s1816] ss:$4 sm:$0xff] %v1787
        %1844 = vst [vmem:[%s1818] ss:$4 sm:$0xff] %v1788
        %1845 = vst [vmem:[%s1820] ss:$4 sm:$0xff] %v1789
        %v1846 = vld.sshfl [vmem:[#allocation1] sm:$0xff pattern:$0x73625140]
        %v1847 = vsel %vm411, %v1830, 0
        %v1849 = vsel %vm411, %v1831, 0
        %v1851 = vsel %vm411, %v1840, 0
        %v1853 = vsel %vm411, %v1841, 0
        %v1855 = vsel %vm411, %v1846, 0
        %1857 = vmatpush.msra.mxu0 0.0
        %1858 = vmatpush.msra.mxu0 0.0
        %1859 = vmatpush.msra.mxu0 0.0
        %1860 = vmatpush.msra.mxu0 0.0
        %1861 = vmatpush.msra.mxu0 0.0
        %1862 = vmatpush.msra.mxu0 0.0
        %1863 = vmatpush.msra.mxu0 0.0
        %1864 = vmatpush.msra.mxu0 0.0
        %1865 = vmatpush.msra.mxu0 0.0
        %1866 = vmatpush.msra.mxu0 0.0
        %1867 = vmatpush.msra.mxu0 0.0
        %1868 = vmatpush.msra.mxu0 0.0
        %1869 = vmatpush.msra.mxu0 0.0
        %1870 = vmatpush.msra.mxu0 0.0
        %1871 = vmatpush.msra.mxu0 0.0
        %1872 = vmatpush.msra.mxu0 %v1790
        %1873 = vmatmul.f32.gmra.mxu0 %v1847
        %v1874 = vpop.f32.mrf.mxu0
        %v1875 = vadd.f32 %v1793, %v1874
        %1876 = vmatmul.f32.gmra.mxu0 %v1849
        %v1877 = vpop.f32.mrf.mxu0
        %v1878 = vadd.f32 %v1793, %v1877
        %1879 = vmatmul.f32.gmra.mxu0 %v1851
        %v1880 = vpop.f32.mrf.mxu0
        %v1881 = vadd.f32 %v1793, %v1880
        %1882 = vmatmul.f32.gmra.mxu0 %v1853
        %v1883 = vpop.f32.mrf.mxu0
        %v1884 = vadd.f32 %v1793, %v1883
        %1885 = vmatmul.f32.gmra.mxu0 %v1855
        %v1886 = vpop.f32.mrf.mxu0
        %v1887 = vadd.f32 %v1793, %v1886
        %1888 = vdwg.mxu0
        %v1889 = vld [vmem:[%s10] sm:$0x1]
        %v1890 = vld [vmem:[#allocation2] sm:$0xff]
        %v1891 = vld [vmem:[#allocation2 + $0x8] sm:$0xff]
        %v1892 = vld [vmem:[#allocation2 + $0x10] sm:$0xff]
        %v1893 = vld [vmem:[#allocation2 + $0x18] sm:$0xff]
        %v1894 = vld [vmem:[#allocation2 + $0x20] sm:$0xff]
        %1896 = vset.pattern.permute.xlu0 0
        %1897 = vperm.xlu0 %1896, %v1875
        %v1898 = vpop.permute.xlu0 %1897
        %1901 = vset.pattern.permute.xlu0 0
        %1902 = vperm.xlu0 %1901, %v1878
        %v1903 = vpop.permute.xlu0 %1902
        %1906 = vset.pattern.permute.xlu0 0
        %1907 = vperm.xlu0 %1906, %v1881
        %v1908 = vpop.permute.xlu0 %1907
        %1911 = vset.pattern.permute.xlu0 0
        %1912 = vperm.xlu0 %1911, %v1884
        %v1913 = vpop.permute.xlu0 %1912
        %1916 = vset.pattern.permute.xlu0 0
        %1917 = vperm.xlu0 %1916, %v1887
        %v1918 = vpop.permute.xlu0 %1917
        %v1920 = vmul.f32 %v1898, %v1890
        %v1921 = vmul.f32 %v1903, %v1891
        %v1922 = vmul.f32 %v1908, %v1892
        %v1923 = vmul.f32 %v1913, %v1893
        %v1924 = vmul.f32 %v1918, %v1894
        %vm1925 = vcmask 392192
        %v1926 = vsel %vm1925, %v1920, 0.0
        %v1927 = vsel %vm1925, %v1921, 0.0
        %v1928 = vadd.f32 %v1926, %v1927
        %v1929 = vsel %vm1925, %v1922, 0.0
        %v1930 = vadd.f32 %v1928, %v1929
        %v1931 = vsel %vm1925, %v1923, 0.0
        %v1932 = vadd.f32 %v1930, %v1931
        %v1933 = vsel %vm1925, %v1924, 0.0
        %v1934 = vadd.f32 %v1932, %v1933
        %v1935 = vrot.slane %v1934, 4
        %v1936 = vadd.f32 %v1934, %v1935
        %v1937 = vrot.slane %v1936, 2
        %v1938 = vadd.f32 %v1936, %v1937
        %v1939 = vrot.slane %v1938, 1
        %v1940 = vadd.f32 %v1938, %v1939
        %v1941 = vadd.f32 %v1889, %v1940
        %s1942 = scalar_lea.vmem [#allocation2], 40
        %v1943 = vld [vmem:[%s1942] sm:$0xff]
        %v1944 = vld [vmem:[%s1942 + $0x8] sm:$0xff]
        %v1945 = vld [vmem:[%s1942 + $0x10] sm:$0xff]
        %v1946 = vld [vmem:[%s1942 + $0x18] sm:$0xff]
        %v1947 = vld [vmem:[%s1942 + $0x20] sm:$0xff]
        %1948 = vset.pattern.permute.xlu0 1
        %1949 = vperm.xlu0 %1948, %v1875
        %v1950 = vpop.permute.xlu0 %1949
        %1952 = vset.pattern.permute.xlu0 1
        %1953 = vperm.xlu0 %1952, %v1878
        %v1954 = vpop.permute.xlu0 %1953
        %1956 = vset.pattern.permute.xlu0 1
        %1957 = vperm.xlu0 %1956, %v1881
        %v1958 = vpop.permute.xlu0 %1957
        %1960 = vset.pattern.permute.xlu0 1
        %1961 = vperm.xlu0 %1960, %v1884
        %v1962 = vpop.permute.xlu0 %1961
        %1964 = vset.pattern.permute.xlu0 1
        %1965 = vperm.xlu0 %1964, %v1887
        %v1966 = vpop.permute.xlu0 %1965
        %v1968 = vmul.f32 %v1950, %v1943
        %v1969 = vmul.f32 %v1954, %v1944
        %v1970 = vmul.f32 %v1958, %v1945
        %v1971 = vmul.f32 %v1962, %v1946
        %v1972 = vmul.f32 %v1966, %v1947
        %v1973 = vsel %vm1925, %v1968, 0.0
        %v1974 = vsel %vm1925, %v1969, 0.0
        %v1975 = vadd.f32 %v1973, %v1974
        %v1976 = vsel %vm1925, %v1970, 0.0
        %v1977 = vadd.f32 %v1975, %v1976
        %v1978 = vsel %vm1925, %v1971, 0.0
        %v1979 = vadd.f32 %v1977, %v1978
        %v1980 = vsel %vm1925, %v1972, 0.0
        %v1981 = vadd.f32 %v1979, %v1980
        %v1982 = vrot.slane %v1981, 4
        %v1983 = vadd.f32 %v1981, %v1982
        %v1984 = vrot.slane %v1983, 2
        %v1985 = vadd.f32 %v1983, %v1984
        %v1986 = vrot.slane %v1985, 1
        %v1987 = vadd.f32 %v1985, %v1986
        %v1988 = vadd.f32 %v1941, %v1987
        %s1989 = scalar_lea.vmem [#allocation2], 80
        %v1990 = vld [vmem:[%s1989] sm:$0xff]
        %v1991 = vld [vmem:[%s1989 + $0x8] sm:$0xff]
        %v1992 = vld [vmem:[%s1989 + $0x10] sm:$0xff]
        %v1993 = vld [vmem:[%s1989 + $0x18] sm:$0xff]
        %v1994 = vld [vmem:[%s1989 + $0x20] sm:$0xff]
        %1995 = vset.pattern.permute.xlu0 2
        %1996 = vperm.xlu0 %1995, %v1875
        %v1997 = vpop.permute.xlu0 %1996
        %1999 = vset.pattern.permute.xlu0 2
        %2000 = vperm.xlu0 %1999, %v1878
        %v2001 = vpop.permute.xlu0 %2000
        %2003 = vset.pattern.permute.xlu0 2
        %2004 = vperm.xlu0 %2003, %v1881
        %v2005 = vpop.permute.xlu0 %2004
        %2007 = vset.pattern.permute.xlu0 2
        %2008 = vperm.xlu0 %2007, %v1884
        %v2009 = vpop.permute.xlu0 %2008
        %2011 = vset.pattern.permute.xlu0 2
        %2012 = vperm.xlu0 %2011, %v1887
        %v2013 = vpop.permute.xlu0 %2012
        %v2015 = vmul.f32 %v1997, %v1990
        %v2016 = vmul.f32 %v2001, %v1991
        %v2017 = vmul.f32 %v2005, %v1992
        %v2018 = vmul.f32 %v2009, %v1993
        %v2019 = vmul.f32 %v2013, %v1994
        %v2020 = vsel %vm1925, %v2015, 0.0
        %v2021 = vsel %vm1925, %v2016, 0.0
        %v2022 = vadd.f32 %v2020, %v2021
        %v2023 = vsel %vm1925, %v2017, 0.0
        %v2024 = vadd.f32 %v2022, %v2023
        %v2025 = vsel %vm1925, %v2018, 0.0
        %v2026 = vadd.f32 %v2024, %v2025
        %v2027 = vsel %vm1925, %v2019, 0.0
        %v2028 = vadd.f32 %v2026, %v2027
        %v2029 = vrot.slane %v2028, 4
        %v2030 = vadd.f32 %v2028, %v2029
        %v2031 = vrot.slane %v2030, 2
        %v2032 = vadd.f32 %v2030, %v2031
        %v2033 = vrot.slane %v2032, 1
        %v2034 = vadd.f32 %v2032, %v2033
        %v2035 = vadd.f32 %v1988, %v2034
        %s2036 = scalar_lea.vmem [#allocation2], 120
        %v2037 = vld [vmem:[%s2036] sm:$0xff]
        %v2038 = vld [vmem:[%s2036 + $0x8] sm:$0xff]
        %v2039 = vld [vmem:[%s2036 + $0x10] sm:$0xff]
        %v2040 = vld [vmem:[%s2036 + $0x18] sm:$0xff]
        %v2041 = vld [vmem:[%s2036 + $0x20] sm:$0xff]
        %2042 = vset.pattern.permute.xlu0 3
        %2043 = vperm.xlu0 %2042, %v1875
        %v2044 = vpop.permute.xlu0 %2043
        %2046 = vset.pattern.permute.xlu0 3
        %2047 = vperm.xlu0 %2046, %v1878
        %v2048 = vpop.permute.xlu0 %2047
        %2050 = vset.pattern.permute.xlu0 3
        %2051 = vperm.xlu0 %2050, %v1881
        %v2052 = vpop.permute.xlu0 %2051
        %2054 = vset.pattern.permute.xlu0 3
        %2055 = vperm.xlu0 %2054, %v1884
        %v2056 = vpop.permute.xlu0 %2055
        %2058 = vset.pattern.permute.xlu0 3
        %2059 = vperm.xlu0 %2058, %v1887
        %v2060 = vpop.permute.xlu0 %2059
        %v2062 = vmul.f32 %v2044, %v2037
        %v2063 = vmul.f32 %v2048, %v2038
        %v2064 = vmul.f32 %v2052, %v2039
        %v2065 = vmul.f32 %v2056, %v2040
        %v2066 = vmul.f32 %v2060, %v2041
        %v2067 = vsel %vm1925, %v2062, 0.0
        %v2068 = vsel %vm1925, %v2063, 0.0
        %v2069 = vadd.f32 %v2067, %v2068
        %v2070 = vsel %vm1925, %v2064, 0.0
        %v2071 = vadd.f32 %v2069, %v2070
        %v2072 = vsel %vm1925, %v2065, 0.0
        %v2073 = vadd.f32 %v2071, %v2072
        %v2074 = vsel %vm1925, %v2066, 0.0
        %v2075 = vadd.f32 %v2073, %v2074
        %v2076 = vrot.slane %v2075, 4
        %v2077 = vadd.f32 %v2075, %v2076
        %v2078 = vrot.slane %v2077, 2
        %v2079 = vadd.f32 %v2077, %v2078
        %v2080 = vrot.slane %v2079, 1
        %v2081 = vadd.f32 %v2079, %v2080
        %v2082 = vadd.f32 %v2035, %v2081
        %s2083 = scalar_lea.vmem [#allocation2], 160
        %v2084 = vld [vmem:[%s2083] sm:$0xff]
        %v2085 = vld [vmem:[%s2083 + $0x8] sm:$0xff]
        %v2086 = vld [vmem:[%s2083 + $0x10] sm:$0xff]
        %v2087 = vld [vmem:[%s2083 + $0x18] sm:$0xff]
        %v2088 = vld [vmem:[%s2083 + $0x20] sm:$0xff]
        %2089 = vset.pattern.permute.xlu0 4
        %2090 = vperm.xlu0 %2089, %v1875
        %v2091 = vpop.permute.xlu0 %2090
        %2093 = vset.pattern.permute.xlu0 4
        %2094 = vperm.xlu0 %2093, %v1878
        %v2095 = vpop.permute.xlu0 %2094
        %2097 = vset.pattern.permute.xlu0 4
        %2098 = vperm.xlu0 %2097, %v1881
        %v2099 = vpop.permute.xlu0 %2098
        %2101 = vset.pattern.permute.xlu0 4
        %2102 = vperm.xlu0 %2101, %v1884
        %v2103 = vpop.permute.xlu0 %2102
        %2105 = vset.pattern.permute.xlu0 4
        %2106 = vperm.xlu0 %2105, %v1887
        %v2107 = vpop.permute.xlu0 %2106
        %v2109 = vmul.f32 %v2091, %v2084
        %v2110 = vmul.f32 %v2095, %v2085
        %v2111 = vmul.f32 %v2099, %v2086
        %v2112 = vmul.f32 %v2103, %v2087
        %v2113 = vmul.f32 %v2107, %v2088
        %v2114 = vsel %vm1925, %v2109, 0.0
        %v2115 = vsel %vm1925, %v2110, 0.0
        %v2116 = vadd.f32 %v2114, %v2115
        %v2117 = vsel %vm1925, %v2111, 0.0
        %v2118 = vadd.f32 %v2116, %v2117
        %v2119 = vsel %vm1925, %v2112, 0.0
        %v2120 = vadd.f32 %v2118, %v2119
        %v2121 = vsel %vm1925, %v2113, 0.0
        %v2122 = vadd.f32 %v2120, %v2121
        %v2123 = vrot.slane %v2122, 4
        %v2124 = vadd.f32 %v2122, %v2123
        %v2125 = vrot.slane %v2124, 2
        %v2126 = vadd.f32 %v2124, %v2125
        %v2127 = vrot.slane %v2126, 1
        %v2128 = vadd.f32 %v2126, %v2127
        %v2129 = vadd.f32 %v2082, %v2128
        %s2130 = scalar_lea.vmem [#allocation2], 200
        %v2131 = vld [vmem:[%s2130] sm:$0xff]
        %v2132 = vld [vmem:[%s2130 + $0x8] sm:$0xff]
        %v2133 = vld [vmem:[%s2130 + $0x10] sm:$0xff]
        %v2134 = vld [vmem:[%s2130 + $0x18] sm:$0xff]
        %v2135 = vld [vmem:[%s2130 + $0x20] sm:$0xff]
        %2136 = vset.pattern.permute.xlu0 5
        %2137 = vperm.xlu0 %2136, %v1875
        %v2138 = vpop.permute.xlu0 %2137
        %2140 = vset.pattern.permute.xlu0 5
        %2141 = vperm.xlu0 %2140, %v1878
        %v2142 = vpop.permute.xlu0 %2141
        %2144 = vset.pattern.permute.xlu0 5
        %2145 = vperm.xlu0 %2144, %v1881
        %v2146 = vpop.permute.xlu0 %2145
        %2148 = vset.pattern.permute.xlu0 5
        %2149 = vperm.xlu0 %2148, %v1884
        %v2150 = vpop.permute.xlu0 %2149
        %2152 = vset.pattern.permute.xlu0 5
        %2153 = vperm.xlu0 %2152, %v1887
        %v2154 = vpop.permute.xlu0 %2153
        %v2156 = vmul.f32 %v2138, %v2131
        %v2157 = vmul.f32 %v2142, %v2132
        %v2158 = vmul.f32 %v2146, %v2133
        %v2159 = vmul.f32 %v2150, %v2134
        %v2160 = vmul.f32 %v2154, %v2135
        %v2161 = vsel %vm1925, %v2156, 0.0
        %v2162 = vsel %vm1925, %v2157, 0.0
        %v2163 = vadd.f32 %v2161, %v2162
        %v2164 = vsel %vm1925, %v2158, 0.0
        %v2165 = vadd.f32 %v2163, %v2164
        %v2166 = vsel %vm1925, %v2159, 0.0
        %v2167 = vadd.f32 %v2165, %v2166
        %v2168 = vsel %vm1925, %v2160, 0.0
        %v2169 = vadd.f32 %v2167, %v2168
        %v2170 = vrot.slane %v2169, 4
        %v2171 = vadd.f32 %v2169, %v2170
        %v2172 = vrot.slane %v2171, 2
        %v2173 = vadd.f32 %v2171, %v2172
        %v2174 = vrot.slane %v2173, 1
        %v2175 = vadd.f32 %v2173, %v2174
        %v2176 = vadd.f32 %v2129, %v2175
        %s2177 = scalar_lea.vmem [#allocation2], 240
        %v2178 = vld [vmem:[%s2177] sm:$0xff]
        %v2179 = vld [vmem:[%s2177 + $0x8] sm:$0xff]
        %v2180 = vld [vmem:[%s2177 + $0x10] sm:$0xff]
        %v2181 = vld [vmem:[%s2177 + $0x18] sm:$0xff]
        %v2182 = vld [vmem:[%s2177 + $0x20] sm:$0xff]
        %2183 = vset.pattern.permute.xlu0 6
        %2184 = vperm.xlu0 %2183, %v1875
        %v2185 = vpop.permute.xlu0 %2184
        %2187 = vset.pattern.permute.xlu0 6
        %2188 = vperm.xlu0 %2187, %v1878
        %v2189 = vpop.permute.xlu0 %2188
        %2191 = vset.pattern.permute.xlu0 6
        %2192 = vperm.xlu0 %2191, %v1881
        %v2193 = vpop.permute.xlu0 %2192
        %2195 = vset.pattern.permute.xlu0 6
        %2196 = vperm.xlu0 %2195, %v1884
        %v2197 = vpop.permute.xlu0 %2196
        %2199 = vset.pattern.permute.xlu0 6
        %2200 = vperm.xlu0 %2199, %v1887
        %v2201 = vpop.permute.xlu0 %2200
        %v2203 = vmul.f32 %v2185, %v2178
        %v2204 = vmul.f32 %v2189, %v2179
        %v2205 = vmul.f32 %v2193, %v2180
        %v2206 = vmul.f32 %v2197, %v2181
        %v2207 = vmul.f32 %v2201, %v2182
        %v2208 = vsel %vm1925, %v2203, 0.0
        %v2209 = vsel %vm1925, %v2204, 0.0
        %v2210 = vadd.f32 %v2208, %v2209
        %v2211 = vsel %vm1925, %v2205, 0.0
        %v2212 = vadd.f32 %v2210, %v2211
        %v2213 = vsel %vm1925, %v2206, 0.0
        %v2214 = vadd.f32 %v2212, %v2213
        %v2215 = vsel %vm1925, %v2207, 0.0
        %v2216 = vadd.f32 %v2214, %v2215
        %v2217 = vrot.slane %v2216, 4
        %v2218 = vadd.f32 %v2216, %v2217
        %v2219 = vrot.slane %v2218, 2
        %v2220 = vadd.f32 %v2218, %v2219
        %v2221 = vrot.slane %v2220, 1
        %v2222 = vadd.f32 %v2220, %v2221
        %v2223 = vadd.f32 %v2176, %v2222
        %s2224 = scalar_lea.vmem [#allocation2], 280
        %v2225 = vld [vmem:[%s2224] sm:$0xff]
        %v2226 = vld [vmem:[%s2224 + $0x8] sm:$0xff]
        %v2227 = vld [vmem:[%s2224 + $0x10] sm:$0xff]
        %v2228 = vld [vmem:[%s2224 + $0x18] sm:$0xff]
        %v2229 = vld [vmem:[%s2224 + $0x20] sm:$0xff]
        %2230 = vset.pattern.permute.xlu0 7
        %2231 = vperm.xlu0 %2230, %v1875
        %v2232 = vpop.permute.xlu0 %2231
        %2234 = vset.pattern.permute.xlu0 7
        %2235 = vperm.xlu0 %2234, %v1878
        %v2236 = vpop.permute.xlu0 %2235
        %2238 = vset.pattern.permute.xlu0 7
        %2239 = vperm.xlu0 %2238, %v1881
        %v2240 = vpop.permute.xlu0 %2239
        %2242 = vset.pattern.permute.xlu0 7
        %2243 = vperm.xlu0 %2242, %v1884
        %v2244 = vpop.permute.xlu0 %2243
        %2246 = vset.pattern.permute.xlu0 7
        %2247 = vperm.xlu0 %2246, %v1887
        %v2248 = vpop.permute.xlu0 %2247
        %v2250 = vmul.f32 %v2232, %v2225
        %v2251 = vmul.f32 %v2236, %v2226
        %v2252 = vmul.f32 %v2240, %v2227
        %v2253 = vmul.f32 %v2244, %v2228
        %v2254 = vmul.f32 %v2248, %v2229
        %v2255 = vsel %vm1925, %v2250, 0.0
        %v2256 = vsel %vm1925, %v2251, 0.0
        %v2257 = vadd.f32 %v2255, %v2256
        %v2258 = vsel %vm1925, %v2252, 0.0
        %v2259 = vadd.f32 %v2257, %v2258
        %v2260 = vsel %vm1925, %v2253, 0.0
        %v2261 = vadd.f32 %v2259, %v2260
        %v2262 = vsel %vm1925, %v2254, 0.0
        %v2263 = vadd.f32 %v2261, %v2262
        %v2264 = vrot.slane %v2263, 4
        %v2265 = vadd.f32 %v2263, %v2264
        %v2266 = vrot.slane %v2265, 2
        %v2267 = vadd.f32 %v2265, %v2266
        %v2268 = vrot.slane %v2267, 1
        %v2269 = vadd.f32 %v2267, %v2268
        %v2270 = vadd.f32 %v2223, %v2269
        %vm2271 = vcmask 385024
        %2272 = vst.msk [vmem:[%s395] sm:$0x1] %vm2271, %v2270
        %s2273 = sand.u32 %s270, 1
        %s2274 = scalar_lea.sflag [#allocation4], %s2273
        %s2275 = sand.u32 %s270, 1
        %s2276 = scalar_lea.vmem [#allocation5], %s2275
        // Predicated region
        $region69: #{tpu_custom_call.1} parent=63 // pred_check
          %p2277 = pneg %p280
        $region70: #{tpu_custom_call.1} parent=63 // pred_check_branch
          %2279 = sbr.rel (%p2277) target = $region72
        $region71: #{tpu_custom_call.1} parent=63 // pred_region
          %2281 = vsyncadd %s2274, 0
          %s2282 = scalar_lea.hbm %s11, %s26
          %s2284 = sshll.u32 %s2276, 4
          %s2285 = int_to_ptr.vmem [resolvable:$true] %s2284
          %s2286 = sshll.u32 %s2282, 4
          %s2287 = int_to_ptr.hbm [resolvable:$true] %s2286
          %2289 = dma.vmem_to_hbm [thread:$0]  %s2285, 16, %s2287, %s2274
        $region72: #{tpu_custom_call.1} parent=63 // pred_fallthru
          _
      $region64: #{tpu_custom_call.1} parent=5 // pred_fallthru
        _
      %p2290 = scmp.le.s32.totalorder 2, %s21
      // Predicated region
      $region73: #{tpu_custom_call.1} parent=5 // pred_check
        %p2291 = pneg %p2290
      $region74: #{tpu_custom_call.1} parent=5 // pred_check_branch
        %2293 = sbr.rel (%p2291) target = $region76
      $region75: #{tpu_custom_call.1} parent=5 // pred_region
        %s2294 = ssub.s32 %s21, 2
        // Predicated region
        $region77: #{tpu_custom_call.1} parent=75 // pred_check
          %p2295 = pneg %p286
        $region78: #{tpu_custom_call.1} parent=75 // pred_check_branch
          %2297 = sbr.rel (%p2295) target = $region80
        $region79: #{tpu_custom_call.1} parent=75 // pred_region
          %s2298 = sand.u32 %s271, 1
          %s2299 = scalar_lea.sflag [#allocation4], %s2298
          %s2300 = sand.u32 %s271, 1
          %s2301 = scalar_lea.vmem [#allocation5], %s2300
          %2303 = dma.done %s2299, 16
        $region80: #{tpu_custom_call.1} parent=75 // pred_fallthru
          _
      $region76: #{tpu_custom_call.1} parent=5 // pred_fallthru
        _
    $region6: #{tpu_custom_call.1} parent=1 // loop_footer
      %s25 = sadd.s32 1, %s21
    $region7: #{tpu_custom_call.1} parent=1 // loop_footer_branch
      %20 = sbr.rel target = $region3
    $region8: #{tpu_custom_call.1} parent=1 // loop_exit
      _
    %2304 = vsyncpa [#allocation3], 1
    %s2305 = scalar_lea.sflag [#allocation3], 1
    %2306 = vsyncpa %s2305, 1
    %2307 = vsyncpa [#allocation4], 1
    %s2308 = scalar_lea.sflag [#allocation4], 1
    %2309 = vsyncpa %s2308, 1

</llo_original>
